<compile_context>
chip_gen: v7x
topology: tpu7x:2x2x1
jax: 0.10.0
libtpu: 0.0.40
codegen_flags: <defaults>
</compile_context>

<pallas_src>
import functools
import math

import jax
import jax.numpy as jnp
from jax.experimental import pallas as pl
from jax.experimental.pallas import tpu as pltpu

# ----------------------- model hyper-parameters (small) ----------------------
BATCH = 2
WINDOW = 8          # window_size == sequence length of one local window
HIDDEN = 32         # hidden_dim
NUM_HEADS = 4
HEAD_DIM = HIDDEN // NUM_HEADS
FFN_DIM = 4 * HIDDEN
LN_EPS = 1e-5       # PyTorch nn.LayerNorm default
SCALE = 1.0 / math.sqrt(HEAD_DIM)


# --------------------------------- kernel ------------------------------------
def psead_block_kernel(
    x_ref,
    wqkv_ref, bqkv_ref, wo_ref, bo_ref,
    g1_ref, be1_ref, g2_ref, be2_ref,
    w1_ref, bf1_ref, w2_ref, bf2_ref,
    o_ref,
    attn_ref,                    # VMEM scratch (B*S, H) for head outputs
    *, batch, seq, num_heads, head_dim,
):
    hidden = num_heads * head_dim
    x = x_ref[...]               # (B*S, H)

    def layernorm(z, gamma, beta):
        mu = jnp.mean(z, axis=-1, keepdims=True)
        var = jnp.mean((z - mu) ** 2, axis=-1, keepdims=True)
        return (z - mu) * jax.lax.rsqrt(var + LN_EPS) * gamma + beta

    # ---- attention branch: attn(norm1(x)) ----
    n1 = layernorm(x, g1_ref[...], be1_ref[...])

    # Fused QKV projection: one (B*S, H) x (H, 3H) matmul.  The 1/sqrt(HD)
    # attention scale is already folded into the Q columns of wqkv/bqkv.
    qkv = (jnp.dot(n1, wqkv_ref[...], preferred_element_type=jnp.float32)
           + bqkv_ref[...])                                   # (B*S, 3H)

    # Per-head attention, batched over the leading batch dim.  Head outputs go
    # straight into the VMEM scratch slab (no lane-dim concatenate).
    for h in range(num_heads):
        lo = h * head_dim
        qh = qkv[:, lo:lo + head_dim].reshape(batch, seq, head_dim)
        kh = qkv[:, hidden + lo:hidden + lo + head_dim].reshape(batch, seq, head_dim)
        vh = qkv[:, 2 * hidden + lo:2 * hidden + lo + head_dim].reshape(batch, seq, head_dim)

        s = jnp.einsum('bqd,bkd->bqk', qh, kh,
                       preferred_element_type=jnp.float32)     # (B, S, S)
        s = s - jnp.max(s, axis=-1, keepdims=True)
        p = jnp.exp(s)
        p = p * pl.reciprocal(jnp.sum(p, axis=-1, keepdims=True), approx=True)
        oh = jnp.einsum('bqk,bkd->bqd', p, vh,
                        preferred_element_type=jnp.float32)    # (B, S, HD)
        attn_ref[:, lo:lo + head_dim] = oh.reshape(batch * seq, head_dim)

    attn = (jnp.dot(attn_ref[...], wo_ref[...],
                    preferred_element_type=jnp.float32) + bo_ref[...])

    # residual 1 (dropout = identity in eval mode)
    x1 = x + attn

    # ---- FFN branch: ffn(norm2(x1)) ----
    n2 = layernorm(x1, g2_ref[...], be2_ref[...])
    h1 = (jnp.dot(n2, w1_ref[...], preferred_element_type=jnp.float32)
          + bf1_ref[...])
    h1 = jnp.maximum(h1, 0.0)                                  # ReLU
    ff = (jnp.dot(h1, w2_ref[...], preferred_element_type=jnp.float32)
          + bf2_ref[...])

    # residual 2
    o_ref[...] = (x1 + ff).astype(o_ref.dtype)


# -------------------------------- wrapper -------------------------------------
def pack_params(params):
    """One-time parameter transform: fuse QKV and fold in the attention scale."""
    (wq, bq, wk, bk, wv, bv, wo, bo, g1, be1, g2, be2, w1, bf1, w2, bf2) = params
    wqkv = jnp.concatenate([wq * SCALE, wk, wv], axis=1)   # (H, 3H)
    bqkv = jnp.concatenate([bq * SCALE, bk, bv], axis=1)   # (1, 3H)
    return [wqkv, bqkv, wo, bo, g1, be1, g2, be2, w1, bf1, w2, bf2]


@jax.jit
def psead_transformer_block(x, packed_params):
    B, S, H = x.shape
    x2d = x.reshape(B * S, H)   # fold batch into matmul M dim (free leading-dim merge)

    kernel = functools.partial(
        psead_block_kernel,
        batch=B, seq=S, num_heads=NUM_HEADS, head_dim=H // NUM_HEADS)

    vmem = pl.BlockSpec(memory_space=pltpu.MemorySpace.VMEM)  # whole-array VMEM block
    out2d = pl.pallas_call(
        kernel,
        out_shape=jax.ShapeDtypeStruct((B * S, H), x.dtype),
        in_specs=[vmem] * (1 + len(packed_params)),
        out_specs=vmem,
        scratch_shapes=[pltpu.VMEM((B * S, H), jnp.float32)],
    )(x2d, *packed_params)
    return out2d.reshape(B, S, H)


# ------------------------- plain-JAX reference (check) ------------------------
def reference_block(x, params):
    (wq, bq, wk, bk, wv, bv, wo, bo, g1, be1, g2, be2, w1, bf1, w2, bf2) = params

    def ln(z, g, b):
        mu = jnp.mean(z, axis=-1, keepdims=True)
        var = jnp.mean((z - mu) ** 2, axis=-1, keepdims=True)
        return (z - mu) / jnp.sqrt(var + LN_EPS) * g + b

    B, S, H = x.shape
    n1 = ln(x, g1, be1)
    q = (n1 @ wq + bq).reshape(B, S, NUM_HEADS, HEAD_DIM).transpose(0, 2, 1, 3)
    k = (n1 @ wk + bk).reshape(B, S, NUM_HEADS, HEAD_DIM).transpose(0, 2, 1, 3)
    v = (n1 @ wv + bv).reshape(B, S, NUM_HEADS, HEAD_DIM).transpose(0, 2, 1, 3)
    s = jnp.einsum("bhqd,bhkd->bhqk", q, k) * SCALE
    p = jax.nn.softmax(s, axis=-1)
    a = jnp.einsum("bhqk,bhkd->bhqd", p, v).transpose(0, 2, 1, 3).reshape(B, S, H)
    a = a @ wo + bo
    x1 = x + a
    n2 = ln(x1, g2, be2)
    ff = jnp.maximum(n2 @ w1 + bf1, 0.0) @ w2 + bf2
    return x1 + ff


# --------------------------------- main ---------------------------------------
def make_params(key):
    ks = jax.random.split(key, 8)

    def lin(k, fan_in, fan_out):
        bound = 1.0 / math.sqrt(fan_in)
        kw, kb = jax.random.split(k)
        w = jax.random.uniform(kw, (fan_in, fan_out), jnp.float32, -bound, bound)
        b = jax.random.uniform(kb, (1, fan_out), jnp.float32, -bound, bound)
        return w, b

    wq, bq = lin(ks[0], HIDDEN, HIDDEN)
    wk, bk = lin(ks[1], HIDDEN, HIDDEN)
    wv, bv = lin(ks[2], HIDDEN, HIDDEN)
    wo, bo = lin(ks[3], HIDDEN, HIDDEN)
    g1 = jnp.ones((1, HIDDEN), jnp.float32)
    be1 = jnp.zeros((1, HIDDEN), jnp.float32)
    g2 = jnp.ones((1, HIDDEN), jnp.float32)
    be2 = jnp.zeros((1, HIDDEN), jnp.float32)
    w1, bf1 = lin(ks[4], HIDDEN, FFN_DIM)
    w2, bf2 = lin(ks[5], FFN_DIM, HIDDEN)
    return [wq, bq, wk, bk, wv, bv, wo, bo, g1, be1, g2, be2, w1, bf1, w2, bf2]


if __name__ == "__main__":
    key = jax.random.PRNGKey(0)
    kx, kp = jax.random.split(key)
    x = jax.random.normal(kx, (BATCH, WINDOW, HIDDEN), jnp.float32)
    params = make_params(kp)
    packed = pack_params(params)           # one-time fuse/scale-fold

    out = psead_transformer_block(x, packed)
    out = jax.block_until_ready(out)

    ref = reference_block(x, params)
    assert out.shape == (BATCH, WINDOW, HIDDEN)
    # Tolerance loosened slightly vs exact f32 because the softmax denominator
    # uses the EUP approximate reciprocal (pl.reciprocal(..., approx=True)).
    assert jnp.allclose(out, ref, atol=5e-3, rtol=5e-3), "mismatch vs JAX reference"

    print("KERNEL_OK")
</pallas_src>

<mosaic_0001>
module attributes {stable_mosaic.version = 11 : i64} {
  func.func @psead_block_kernel(%arg0: memref<16x32xf32, #tpu.memory_space<vmem>>, %arg1: memref<32x96xf32, #tpu.memory_space<vmem>>, %arg2: memref<1x96xf32, #tpu.memory_space<vmem>>, %arg3: memref<32x32xf32, #tpu.memory_space<vmem>>, %arg4: memref<1x32xf32, #tpu.memory_space<vmem>>, %arg5: memref<1x32xf32, #tpu.memory_space<vmem>>, %arg6: memref<1x32xf32, #tpu.memory_space<vmem>>, %arg7: memref<1x32xf32, #tpu.memory_space<vmem>>, %arg8: memref<1x32xf32, #tpu.memory_space<vmem>>, %arg9: memref<32x128xf32, #tpu.memory_space<vmem>>, %arg10: memref<1x128xf32, #tpu.memory_space<vmem>>, %arg11: memref<128x32xf32, #tpu.memory_space<vmem>>, %arg12: memref<1x32xf32, #tpu.memory_space<vmem>>, %arg13: memref<16x32xf32, #tpu.memory_space<vmem>>, %arg14: memref<16x32xf32, #tpu.memory_space<vmem>>) attributes {dimension_semantics = [], scalar_prefetch = 0 : i64, scratch_operands = 1 : i64, tpu.core_type = #tpu.core_type<tc>} {
    %c0 = arith.constant 0 : index
    %c0_0 = arith.constant 0 : index
    %0 = vector.load %arg0[%c0, %c0_0] : memref<16x32xf32, #tpu.memory_space<vmem>>, vector<16x32xf32>
    %c0_1 = arith.constant 0 : index
    %c0_2 = arith.constant 0 : index
    %1 = vector.load %arg5[%c0_1, %c0_2] : memref<1x32xf32, #tpu.memory_space<vmem>>, vector<1x32xf32>
    %c0_3 = arith.constant 0 : index
    %c0_4 = arith.constant 0 : index
    %2 = vector.load %arg6[%c0_3, %c0_4] : memref<1x32xf32, #tpu.memory_space<vmem>>, vector<1x32xf32>
    %cst = arith.constant dense<0.000000e+00> : vector<16xf32>
    %3 = vector.multi_reduction <add>, %0, %cst [1] : vector<16x32xf32> to vector<16xf32>
    %4 = vector.shape_cast %3 : vector<16xf32> to vector<16x1xf32>
    %cst_5 = arith.constant 3.200000e+01 : f32
    %5 = vector.broadcast %cst_5 : f32 to vector<16x1xf32>
    %6 = arith.divf %4, %5 : vector<16x1xf32>
    %7 = vector.broadcast %6 : vector<16x1xf32> to vector<16x32xf32>
    %8 = arith.subf %0, %7 : vector<16x32xf32>
    %9 = arith.mulf %8, %8 : vector<16x32xf32>
    %cst_6 = arith.constant dense<0.000000e+00> : vector<16xf32>
    %10 = vector.multi_reduction <add>, %9, %cst_6 [1] : vector<16x32xf32> to vector<16xf32>
    %11 = vector.shape_cast %10 : vector<16xf32> to vector<16x1xf32>
    %cst_7 = arith.constant 3.200000e+01 : f32
    %12 = vector.broadcast %cst_7 : f32 to vector<16x1xf32>
    %13 = arith.divf %11, %12 : vector<16x1xf32>
    %14 = vector.broadcast %6 : vector<16x1xf32> to vector<16x32xf32>
    %15 = arith.subf %0, %14 : vector<16x32xf32>
    %cst_8 = arith.constant 9.99999974E-6 : f32
    %16 = vector.broadcast %cst_8 : f32 to vector<16x1xf32>
    %17 = arith.addf %13, %16 : vector<16x1xf32>
    %18 = math.rsqrt %17 : vector<16x1xf32>
    %19 = vector.broadcast %18 : vector<16x1xf32> to vector<16x32xf32>
    %20 = arith.mulf %15, %19 : vector<16x32xf32>
    %21 = vector.broadcast %1 : vector<1x32xf32> to vector<16x32xf32>
    %22 = arith.mulf %20, %21 : vector<16x32xf32>
    %23 = vector.broadcast %2 : vector<1x32xf32> to vector<16x32xf32>
    %24 = arith.addf %22, %23 : vector<16x32xf32>
    %c0_9 = arith.constant 0 : index
    %c0_10 = arith.constant 0 : index
    %25 = vector.load %arg1[%c0_9, %c0_10] : memref<32x96xf32, #tpu.memory_space<vmem>>, vector<32x96xf32>
    %cst_11 = arith.constant dense<0.000000e+00> : vector<16x96xf32>
    %26 = tpu.matmul %24, %25, %cst_11 {dimension_numbers = #tpu.dot_dimension_numbers<[1], [0], [0], [1], [0, 0, 1, 1], [], []>} : vector<16x32xf32>, vector<32x96xf32>, vector<16x96xf32> -> vector<16x96xf32>
    %c0_12 = arith.constant 0 : index
    %c0_13 = arith.constant 0 : index
    %27 = vector.load %arg2[%c0_12, %c0_13] : memref<1x96xf32, #tpu.memory_space<vmem>>, vector<1x96xf32>
    %28 = vector.broadcast %27 : vector<1x96xf32> to vector<16x96xf32>
    %29 = arith.addf %26, %28 : vector<16x96xf32>
    %30 = vector.extract_strided_slice %29 {offsets = [0, 0], sizes = [16, 8], strides = [1, 1]} : vector<16x96xf32> to vector<16x8xf32>
    %31 = vector.shape_cast %30 : vector<16x8xf32> to vector<2x8x8xf32>
    %32 = vector.extract_strided_slice %29 {offsets = [0, 32], sizes = [16, 8], strides = [1, 1]} : vector<16x96xf32> to vector<16x8xf32>
    %33 = vector.shape_cast %32 : vector<16x8xf32> to vector<2x8x8xf32>
    %34 = vector.extract_strided_slice %29 {offsets = [0, 64], sizes = [16, 8], strides = [1, 1]} : vector<16x96xf32> to vector<16x8xf32>
    %35 = vector.shape_cast %34 : vector<16x8xf32> to vector<2x8x8xf32>
    "tpu.trace_start"() <{level = 10 : i32, message = "bqd,bkd->bqk"}> : () -> ()
    %cst_14 = arith.constant dense<0.000000e+00> : vector<2x8x8xf32>
    %36 = tpu.matmul %31, %33, %cst_14 {dimension_numbers = #tpu.dot_dimension_numbers<[2], [2], [1], [1], [0, 0, 0, 1, 1, 1], [0], [0]>} : vector<2x8x8xf32>, vector<2x8x8xf32>, vector<2x8x8xf32> -> vector<2x8x8xf32>
    "tpu.trace_stop"() : () -> ()
    %cst_15 = arith.constant dense<0xFF800000> : vector<2x8xf32>
    %37 = vector.multi_reduction <maximumf>, %36, %cst_15 [2] : vector<2x8x8xf32> to vector<2x8xf32>
    %38 = vector.shape_cast %37 : vector<2x8xf32> to vector<2x8x1xf32>
    %39 = vector.broadcast %38 : vector<2x8x1xf32> to vector<2x8x8xf32>
    %40 = arith.subf %36, %39 : vector<2x8x8xf32>
    %41 = math.exp %40 : vector<2x8x8xf32>
    %cst_16 = arith.constant dense<0.000000e+00> : vector<2x8xf32>
    %42 = vector.multi_reduction <add>, %41, %cst_16 [2] : vector<2x8x8xf32> to vector<2x8xf32>
    %43 = vector.shape_cast %42 : vector<2x8xf32> to vector<2x8x1xf32>
    %44 = tpu.reciprocal %43 {approx = true} : vector<2x8x1xf32> -> vector<2x8x1xf32>
    %45 = vector.broadcast %44 : vector<2x8x1xf32> to vector<2x8x8xf32>
    %46 = arith.mulf %41, %45 : vector<2x8x8xf32>
    "tpu.trace_start"() <{level = 10 : i32, message = "bqk,bkd->bqd"}> : () -> ()
    %cst_17 = arith.constant dense<0.000000e+00> : vector<2x8x8xf32>
    %47 = tpu.matmul %46, %35, %cst_17 {dimension_numbers = #tpu.dot_dimension_numbers<[2], [1], [1], [2], [0, 0, 0, 1, 1, 2], [0], [0]>} : vector<2x8x8xf32>, vector<2x8x8xf32>, vector<2x8x8xf32> -> vector<2x8x8xf32>
    "tpu.trace_stop"() : () -> ()
    %48 = vector.shape_cast %47 : vector<2x8x8xf32> to vector<16x8xf32>
    %c0_18 = arith.constant 0 : index
    %c0_19 = arith.constant 0 : index
    %49 = vector.load %arg14[%c0_18, %c0_19] : memref<16x32xf32, #tpu.memory_space<vmem>>, vector<16x8xf32>
    tpu.vector_store %arg14[%c0_18, %c0_19], %48 {strides = array<i32>} : memref<16x32xf32, #tpu.memory_space<vmem>>, vector<16x8xf32>,
    %50 = vector.extract_strided_slice %29 {offsets = [0, 8], sizes = [16, 8], strides = [1, 1]} : vector<16x96xf32> to vector<16x8xf32>
    %51 = vector.shape_cast %50 : vector<16x8xf32> to vector<2x8x8xf32>
    %52 = vector.extract_strided_slice %29 {offsets = [0, 40], sizes = [16, 8], strides = [1, 1]} : vector<16x96xf32> to vector<16x8xf32>
    %53 = vector.shape_cast %52 : vector<16x8xf32> to vector<2x8x8xf32>
    %54 = vector.extract_strided_slice %29 {offsets = [0, 72], sizes = [16, 8], strides = [1, 1]} : vector<16x96xf32> to vector<16x8xf32>
    %55 = vector.shape_cast %54 : vector<16x8xf32> to vector<2x8x8xf32>
    "tpu.trace_start"() <{level = 10 : i32, message = "bqd,bkd->bqk"}> : () -> ()
    %cst_20 = arith.constant dense<0.000000e+00> : vector<2x8x8xf32>
    %56 = tpu.matmul %51, %53, %cst_20 {dimension_numbers = #tpu.dot_dimension_numbers<[2], [2], [1], [1], [0, 0, 0, 1, 1, 1], [0], [0]>} : vector<2x8x8xf32>, vector<2x8x8xf32>, vector<2x8x8xf32> -> vector<2x8x8xf32>
    "tpu.trace_stop"() : () -> ()
    %cst_21 = arith.constant dense<0xFF800000> : vector<2x8xf32>
    %57 = vector.multi_reduction <maximumf>, %56, %cst_21 [2] : vector<2x8x8xf32> to vector<2x8xf32>
    %58 = vector.shape_cast %57 : vector<2x8xf32> to vector<2x8x1xf32>
    %59 = vector.broadcast %58 : vector<2x8x1xf32> to vector<2x8x8xf32>
    %60 = arith.subf %56, %59 : vector<2x8x8xf32>
    %61 = math.exp %60 : vector<2x8x8xf32>
    %cst_22 = arith.constant dense<0.000000e+00> : vector<2x8xf32>
    %62 = vector.multi_reduction <add>, %61, %cst_22 [2] : vector<2x8x8xf32> to vector<2x8xf32>
    %63 = vector.shape_cast %62 : vector<2x8xf32> to vector<2x8x1xf32>
    %64 = tpu.reciprocal %63 {approx = true} : vector<2x8x1xf32> -> vector<2x8x1xf32>
    %65 = vector.broadcast %64 : vector<2x8x1xf32> to vector<2x8x8xf32>
    %66 = arith.mulf %61, %65 : vector<2x8x8xf32>
    "tpu.trace_start"() <{level = 10 : i32, message = "bqk,bkd->bqd"}> : () -> ()
    %cst_23 = arith.constant dense<0.000000e+00> : vector<2x8x8xf32>
    %67 = tpu.matmul %66, %55, %cst_23 {dimension_numbers = #tpu.dot_dimension_numbers<[2], [1], [1], [2], [0, 0, 0, 1, 1, 2], [0], [0]>} : vector<2x8x8xf32>, vector<2x8x8xf32>, vector<2x8x8xf32> -> vector<2x8x8xf32>
    "tpu.trace_stop"() : () -> ()
    %68 = vector.shape_cast %67 : vector<2x8x8xf32> to vector<16x8xf32>
    %c0_24 = arith.constant 0 : index
    %c8 = arith.constant 8 : index
    %69 = vector.load %arg14[%c0_24, %c8] : memref<16x32xf32, #tpu.memory_space<vmem>>, vector<16x8xf32>
    tpu.vector_store %arg14[%c0_24, %c8], %68 {strides = array<i32>} : memref<16x32xf32, #tpu.memory_space<vmem>>, vector<16x8xf32>,
    %70 = vector.extract_strided_slice %29 {offsets = [0, 16], sizes = [16, 8], strides = [1, 1]} : vector<16x96xf32> to vector<16x8xf32>
    %71 = vector.shape_cast %70 : vector<16x8xf32> to vector<2x8x8xf32>
    %72 = vector.extract_strided_slice %29 {offsets = [0, 48], sizes = [16, 8], strides = [1, 1]} : vector<16x96xf32> to vector<16x8xf32>
    %73 = vector.shape_cast %72 : vector<16x8xf32> to vector<2x8x8xf32>
    %74 = vector.extract_strided_slice %29 {offsets = [0, 80], sizes = [16, 8], strides = [1, 1]} : vector<16x96xf32> to vector<16x8xf32>
    %75 = vector.shape_cast %74 : vector<16x8xf32> to vector<2x8x8xf32>
    "tpu.trace_start"() <{level = 10 : i32, message = "bqd,bkd->bqk"}> : () -> ()
    %cst_25 = arith.constant dense<0.000000e+00> : vector<2x8x8xf32>
    %76 = tpu.matmul %71, %73, %cst_25 {dimension_numbers = #tpu.dot_dimension_numbers<[2], [2], [1], [1], [0, 0, 0, 1, 1, 1], [0], [0]>} : vector<2x8x8xf32>, vector<2x8x8xf32>, vector<2x8x8xf32> -> vector<2x8x8xf32>
    "tpu.trace_stop"() : () -> ()
    %cst_26 = arith.constant dense<0xFF800000> : vector<2x8xf32>
    %77 = vector.multi_reduction <maximumf>, %76, %cst_26 [2] : vector<2x8x8xf32> to vector<2x8xf32>
    %78 = vector.shape_cast %77 : vector<2x8xf32> to vector<2x8x1xf32>
    %79 = vector.broadcast %78 : vector<2x8x1xf32> to vector<2x8x8xf32>
    %80 = arith.subf %76, %79 : vector<2x8x8xf32>
    %81 = math.exp %80 : vector<2x8x8xf32>
    %cst_27 = arith.constant dense<0.000000e+00> : vector<2x8xf32>
    %82 = vector.multi_reduction <add>, %81, %cst_27 [2] : vector<2x8x8xf32> to vector<2x8xf32>
    %83 = vector.shape_cast %82 : vector<2x8xf32> to vector<2x8x1xf32>
    %84 = tpu.reciprocal %83 {approx = true} : vector<2x8x1xf32> -> vector<2x8x1xf32>
    %85 = vector.broadcast %84 : vector<2x8x1xf32> to vector<2x8x8xf32>
    %86 = arith.mulf %81, %85 : vector<2x8x8xf32>
    "tpu.trace_start"() <{level = 10 : i32, message = "bqk,bkd->bqd"}> : () -> ()
    %cst_28 = arith.constant dense<0.000000e+00> : vector<2x8x8xf32>
    %87 = tpu.matmul %86, %75, %cst_28 {dimension_numbers = #tpu.dot_dimension_numbers<[2], [1], [1], [2], [0, 0, 0, 1, 1, 2], [0], [0]>} : vector<2x8x8xf32>, vector<2x8x8xf32>, vector<2x8x8xf32> -> vector<2x8x8xf32>
    "tpu.trace_stop"() : () -> ()
    %88 = vector.shape_cast %87 : vector<2x8x8xf32> to vector<16x8xf32>
    %c0_29 = arith.constant 0 : index
    %c16 = arith.constant 16 : index
    %89 = vector.load %arg14[%c0_29, %c16] : memref<16x32xf32, #tpu.memory_space<vmem>>, vector<16x8xf32>
    tpu.vector_store %arg14[%c0_29, %c16], %88 {strides = array<i32>} : memref<16x32xf32, #tpu.memory_space<vmem>>, vector<16x8xf32>,
    %90 = vector.extract_strided_slice %29 {offsets = [0, 24], sizes = [16, 8], strides = [1, 1]} : vector<16x96xf32> to vector<16x8xf32>
    %91 = vector.shape_cast %90 : vector<16x8xf32> to vector<2x8x8xf32>
    %92 = vector.extract_strided_slice %29 {offsets = [0, 56], sizes = [16, 8], strides = [1, 1]} : vector<16x96xf32> to vector<16x8xf32>
    %93 = vector.shape_cast %92 : vector<16x8xf32> to vector<2x8x8xf32>
    %94 = vector.extract_strided_slice %29 {offsets = [0, 88], sizes = [16, 8], strides = [1, 1]} : vector<16x96xf32> to vector<16x8xf32>
    %95 = vector.shape_cast %94 : vector<16x8xf32> to vector<2x8x8xf32>
    "tpu.trace_start"() <{level = 10 : i32, message = "bqd,bkd->bqk"}> : () -> ()
    %cst_30 = arith.constant dense<0.000000e+00> : vector<2x8x8xf32>
    %96 = tpu.matmul %91, %93, %cst_30 {dimension_numbers = #tpu.dot_dimension_numbers<[2], [2], [1], [1], [0, 0, 0, 1, 1, 1], [0], [0]>} : vector<2x8x8xf32>, vector<2x8x8xf32>, vector<2x8x8xf32> -> vector<2x8x8xf32>
    "tpu.trace_stop"() : () -> ()
    %cst_31 = arith.constant dense<0xFF800000> : vector<2x8xf32>
    %97 = vector.multi_reduction <maximumf>, %96, %cst_31 [2] : vector<2x8x8xf32> to vector<2x8xf32>
    %98 = vector.shape_cast %97 : vector<2x8xf32> to vector<2x8x1xf32>
    %99 = vector.broadcast %98 : vector<2x8x1xf32> to vector<2x8x8xf32>
    %100 = arith.subf %96, %99 : vector<2x8x8xf32>
    %101 = math.exp %100 : vector<2x8x8xf32>
    %cst_32 = arith.constant dense<0.000000e+00> : vector<2x8xf32>
    %102 = vector.multi_reduction <add>, %101, %cst_32 [2] : vector<2x8x8xf32> to vector<2x8xf32>
    %103 = vector.shape_cast %102 : vector<2x8xf32> to vector<2x8x1xf32>
    %104 = tpu.reciprocal %103 {approx = true} : vector<2x8x1xf32> -> vector<2x8x1xf32>
    %105 = vector.broadcast %104 : vector<2x8x1xf32> to vector<2x8x8xf32>
    %106 = arith.mulf %101, %105 : vector<2x8x8xf32>
    "tpu.trace_start"() <{level = 10 : i32, message = "bqk,bkd->bqd"}> : () -> ()
    %cst_33 = arith.constant dense<0.000000e+00> : vector<2x8x8xf32>
    %107 = tpu.matmul %106, %95, %cst_33 {dimension_numbers = #tpu.dot_dimension_numbers<[2], [1], [1], [2], [0, 0, 0, 1, 1, 2], [0], [0]>} : vector<2x8x8xf32>, vector<2x8x8xf32>, vector<2x8x8xf32> -> vector<2x8x8xf32>
    "tpu.trace_stop"() : () -> ()
    %108 = vector.shape_cast %107 : vector<2x8x8xf32> to vector<16x8xf32>
    %c0_34 = arith.constant 0 : index
    %c24 = arith.constant 24 : index
    %109 = vector.load %arg14[%c0_34, %c24] : memref<16x32xf32, #tpu.memory_space<vmem>>, vector<16x8xf32>
    tpu.vector_store %arg14[%c0_34, %c24], %108 {strides = array<i32>} : memref<16x32xf32, #tpu.memory_space<vmem>>, vector<16x8xf32>,
    %c0_35 = arith.constant 0 : index
    %c0_36 = arith.constant 0 : index
    %110 = vector.load %arg14[%c0_35, %c0_36] : memref<16x32xf32, #tpu.memory_space<vmem>>, vector<16x32xf32>
    %c0_37 = arith.constant 0 : index
    %c0_38 = arith.constant 0 : index
    %111 = vector.load %arg3[%c0_37, %c0_38] : memref<32x32xf32, #tpu.memory_space<vmem>>, vector<32x32xf32>
    %cst_39 = arith.constant dense<0.000000e+00> : vector<16x32xf32>
    %112 = tpu.matmul %110, %111, %cst_39 {dimension_numbers = #tpu.dot_dimension_numbers<[1], [0], [0], [1], [0, 0, 1, 1], [], []>} : vector<16x32xf32>, vector<32x32xf32>, vector<16x32xf32> -> vector<16x32xf32>
    %c0_40 = arith.constant 0 : index
    %c0_41 = arith.constant 0 : index
    %113 = vector.load %arg4[%c0_40, %c0_41] : memref<1x32xf32, #tpu.memory_space<vmem>>, vector<1x32xf32>
    %114 = vector.broadcast %113 : vector<1x32xf32> to vector<16x32xf32>
    %115 = arith.addf %112, %114 : vector<16x32xf32>
    %116 = arith.addf %0, %115 : vector<16x32xf32>
    %c0_42 = arith.constant 0 : index
    %c0_43 = arith.constant 0 : index
    %117 = vector.load %arg7[%c0_42, %c0_43] : memref<1x32xf32, #tpu.memory_space<vmem>>, vector<1x32xf32>
    %c0_44 = arith.constant 0 : index
    %c0_45 = arith.constant 0 : index
    %118 = vector.load %arg8[%c0_44, %c0_45] : memref<1x32xf32, #tpu.memory_space<vmem>>, vector<1x32xf32>
    %cst_46 = arith.constant dense<0.000000e+00> : vector<16xf32>
    %119 = vector.multi_reduction <add>, %116, %cst_46 [1] : vector<16x32xf32> to vector<16xf32>
    %120 = vector.shape_cast %119 : vector<16xf32> to vector<16x1xf32>
    %cst_47 = arith.constant 3.200000e+01 : f32
    %121 = vector.broadcast %cst_47 : f32 to vector<16x1xf32>
    %122 = arith.divf %120, %121 : vector<16x1xf32>
    %123 = vector.broadcast %122 : vector<16x1xf32> to vector<16x32xf32>
    %124 = arith.subf %116, %123 : vector<16x32xf32>
    %125 = arith.mulf %124, %124 : vector<16x32xf32>
    %cst_48 = arith.constant dense<0.000000e+00> : vector<16xf32>
    %126 = vector.multi_reduction <add>, %125, %cst_48 [1] : vector<16x32xf32> to vector<16xf32>
    %127 = vector.shape_cast %126 : vector<16xf32> to vector<16x1xf32>
    %cst_49 = arith.constant 3.200000e+01 : f32
    %128 = vector.broadcast %cst_49 : f32 to vector<16x1xf32>
    %129 = arith.divf %127, %128 : vector<16x1xf32>
    %130 = vector.broadcast %122 : vector<16x1xf32> to vector<16x32xf32>
    %131 = arith.subf %116, %130 : vector<16x32xf32>
    %cst_50 = arith.constant 9.99999974E-6 : f32
    %132 = vector.broadcast %cst_50 : f32 to vector<16x1xf32>
    %133 = arith.addf %129, %132 : vector<16x1xf32>
    %134 = math.rsqrt %133 : vector<16x1xf32>
    %135 = vector.broadcast %134 : vector<16x1xf32> to vector<16x32xf32>
    %136 = arith.mulf %131, %135 : vector<16x32xf32>
    %137 = vector.broadcast %117 : vector<1x32xf32> to vector<16x32xf32>
    %138 = arith.mulf %136, %137 : vector<16x32xf32>
    %139 = vector.broadcast %118 : vector<1x32xf32> to vector<16x32xf32>
    %140 = arith.addf %138, %139 : vector<16x32xf32>
    %c0_51 = arith.constant 0 : index
    %c0_52 = arith.constant 0 : index
    %141 = vector.load %arg9[%c0_51, %c0_52] : memref<32x128xf32, #tpu.memory_space<vmem>>, vector<32x128xf32>
    %cst_53 = arith.constant dense<0.000000e+00> : vector<16x128xf32>
    %142 = tpu.matmul %140, %141, %cst_53 {dimension_numbers = #tpu.dot_dimension_numbers<[1], [0], [0], [1], [0, 0, 1, 1], [], []>} : vector<16x32xf32>, vector<32x128xf32>, vector<16x128xf32> -> vector<16x128xf32>
    %c0_54 = arith.constant 0 : index
    %c0_55 = arith.constant 0 : index
    %143 = vector.load %arg10[%c0_54, %c0_55] : memref<1x128xf32, #tpu.memory_space<vmem>>, vector<1x128xf32>
    %144 = vector.broadcast %143 : vector<1x128xf32> to vector<16x128xf32>
    %145 = arith.addf %142, %144 : vector<16x128xf32>
    %cst_56 = arith.constant 0.000000e+00 : f32
    %146 = vector.broadcast %cst_56 : f32 to vector<16x128xf32>
    %147 = arith.maximumf %145, %146 : vector<16x128xf32>
    %c0_57 = arith.constant 0 : index
    %c0_58 = arith.constant 0 : index
    %148 = vector.load %arg11[%c0_57, %c0_58] : memref<128x32xf32, #tpu.memory_space<vmem>>, vector<128x32xf32>
    %cst_59 = arith.constant dense<0.000000e+00> : vector<16x32xf32>
    %149 = tpu.matmul %147, %148, %cst_59 {dimension_numbers = #tpu.dot_dimension_numbers<[1], [0], [0], [1], [0, 0, 1, 1], [], []>} : vector<16x128xf32>, vector<128x32xf32>, vector<16x32xf32> -> vector<16x32xf32>
    %c0_60 = arith.constant 0 : index
    %c0_61 = arith.constant 0 : index
    %150 = vector.load %arg12[%c0_60, %c0_61] : memref<1x32xf32, #tpu.memory_space<vmem>>, vector<1x32xf32>
    %151 = vector.broadcast %150 : vector<1x32xf32> to vector<16x32xf32>
    %152 = arith.addf %149, %151 : vector<16x32xf32>
    %153 = arith.addf %116, %152 : vector<16x32xf32>
    %c0_62 = arith.constant 0 : index
    %c0_63 = arith.constant 0 : index
    %154 = vector.load %arg13[%c0_62, %c0_63] : memref<16x32xf32, #tpu.memory_space<vmem>>, vector<16x32xf32>
    tpu.vector_store %arg13[%c0_62, %c0_63], %153 {strides = array<i32>} : memref<16x32xf32, #tpu.memory_space<vmem>>, vector<16x32xf32>,
    return
  }
}

</mosaic_0001>

<llo_original>
// kernel: psead_transformer_block.1
$region0: #{psead_transformer_block.1}
  #allocation0 [shape = 'u32[]', space=smem, size = 0x4, offset = 0x4, fixed_abs, tag = 'smem constant byte address 0x4 - core index']
  #allocation1 [shape = 'u32[144,128]{1,0:T(1,128)}', space=vmem, size = 0x12000, scoped, tag = 'internal scratch']
  #allocation2 [shape = 'f32[16,32]{1,0:T(8,128)}', space=vmem, size = 0x2000, scoped, tag = 'scratch operand']
  %s0 = inlined_call_operand.vmem [shape: f32[16,32], index: 0, kind: input, shape index: {}]
  %s1 = inlined_call_operand.vmem [shape: f32[32,96], index: 1, kind: input, shape index: {}]
  %s2 = inlined_call_operand.vmem [shape: f32[1,96], index: 2, kind: input, shape index: {}]
  %s3 = inlined_call_operand.vmem [shape: f32[32,32], index: 3, kind: input, shape index: {}]
  %s4 = inlined_call_operand.vmem [shape: f32[1,32], index: 4, kind: input, shape index: {}]
  %s5 = inlined_call_operand.vmem [shape: f32[1,32], index: 5, kind: input, shape index: {}]
  %s6 = inlined_call_operand.vmem [shape: f32[1,32], index: 6, kind: input, shape index: {}]
  %s7 = inlined_call_operand.vmem [shape: f32[1,32], index: 7, kind: input, shape index: {}]
  %s8 = inlined_call_operand.vmem [shape: f32[1,32], index: 8, kind: input, shape index: {}]
  %s9 = inlined_call_operand.vmem [shape: f32[32,128], index: 9, kind: input, shape index: {}]
  %s10 = inlined_call_operand.vmem [shape: f32[1,128], index: 10, kind: input, shape index: {}]
  %s11 = inlined_call_operand.vmem [shape: f32[128,32], index: 11, kind: input, shape index: {}]
  %s12 = inlined_call_operand.vmem [shape: f32[1,32], index: 12, kind: input, shape index: {}]
  %s13 = inlined_call_operand.hbm [shape: f32[16,32], index: 13, kind: output, shape index: {}]
  %s14 = sld [smem:[#allocation0]]
  $region62: #{psead_transformer_block.1} parent=0
    _
  %s16 = ssub.s32 1, %s14
  %s17 = scalar_select 0, %s16, %s14
  $region1: #{psead_transformer_block.1} parent=0
    #allocation3 [shape = 'u8[8192]{0}', space=vmem, size = 0x2000, scoped, tag = 'output window, operand 0, single buffered']
    #allocation4 [shape = 's32[1]{0}', space=sflag, size = 0x4, scoped, tag = 'scoped memory for psead_transformer_block.1']
    %18 = vsyncpa [#allocation4], 0
    // Predicated region
    $region2: #{psead_transformer_block.1} parent=1 // pred_check
      _
    $region3: #{psead_transformer_block.1} parent=1 // pred_check_branch
      %20 = sbr.rel (0) target = $region5
    $region4: #{psead_transformer_block.1} parent=1 // pred_region
      _
    $region5: #{psead_transformer_block.1} parent=1 // pred_fallthru
      _
    // Predicated region
    $region6: #{psead_transformer_block.1} parent=1 // pred_check
      _
    $region7: #{psead_transformer_block.1} parent=1 // pred_check_branch
      %22 = sbr.rel (0) target = $region9
    $region8: #{psead_transformer_block.1} parent=1 // pred_region
      _
    $region9: #{psead_transformer_block.1} parent=1 // pred_fallthru
      _
    // Predicated region
    $region10: #{psead_transformer_block.1} parent=1 // pred_check
      _
    $region11: #{psead_transformer_block.1} parent=1 // pred_check_branch
      %24 = sbr.rel (0) target = $region13
    $region12: #{psead_transformer_block.1} parent=1 // pred_region
      _
    $region13: #{psead_transformer_block.1} parent=1 // pred_fallthru
      _
    // Predicated region
    $region14: #{psead_transformer_block.1} parent=1 // pred_check
      _
    $region15: #{psead_transformer_block.1} parent=1 // pred_check_branch
      %26 = sbr.rel (0) target = $region17
    $region16: #{psead_transformer_block.1} parent=1 // pred_region
      _
    $region17: #{psead_transformer_block.1} parent=1 // pred_fallthru
      _
    // Predicated region
    $region18: #{psead_transformer_block.1} parent=1 // pred_check
      _
    $region19: #{psead_transformer_block.1} parent=1 // pred_check_branch
      %28 = sbr.rel (0) target = $region21
    $region20: #{psead_transformer_block.1} parent=1 // pred_region
      _
    $region21: #{psead_transformer_block.1} parent=1 // pred_fallthru
      _
    // Predicated region
    $region22: #{psead_transformer_block.1} parent=1 // pred_check
      _
    $region23: #{psead_transformer_block.1} parent=1 // pred_check_branch
      %30 = sbr.rel (0) target = $region25
    $region24: #{psead_transformer_block.1} parent=1 // pred_region
      _
    $region25: #{psead_transformer_block.1} parent=1 // pred_fallthru
      _
    // Predicated region
    $region26: #{psead_transformer_block.1} parent=1 // pred_check
      _
    $region27: #{psead_transformer_block.1} parent=1 // pred_check_branch
      %32 = sbr.rel (0) target = $region29
    $region28: #{psead_transformer_block.1} parent=1 // pred_region
      _
    $region29: #{psead_transformer_block.1} parent=1 // pred_fallthru
      _
    // Predicated region
    $region30: #{psead_transformer_block.1} parent=1 // pred_check
      _
    $region31: #{psead_transformer_block.1} parent=1 // pred_check_branch
      %34 = sbr.rel (0) target = $region33
    $region32: #{psead_transformer_block.1} parent=1 // pred_region
      _
    $region33: #{psead_transformer_block.1} parent=1 // pred_fallthru
      _
    // Predicated region
    $region34: #{psead_transformer_block.1} parent=1 // pred_check
      _
    $region35: #{psead_transformer_block.1} parent=1 // pred_check_branch
      %36 = sbr.rel (0) target = $region37
    $region36: #{psead_transformer_block.1} parent=1 // pred_region
      _
    $region37: #{psead_transformer_block.1} parent=1 // pred_fallthru
      _
    // Predicated region
    $region38: #{psead_transformer_block.1} parent=1 // pred_check
      _
    $region39: #{psead_transformer_block.1} parent=1 // pred_check_branch
      %38 = sbr.rel (0) target = $region41
    $region40: #{psead_transformer_block.1} parent=1 // pred_region
      _
    $region41: #{psead_transformer_block.1} parent=1 // pred_fallthru
      _
    // Predicated region
    $region42: #{psead_transformer_block.1} parent=1 // pred_check
      _
    $region43: #{psead_transformer_block.1} parent=1 // pred_check_branch
      %40 = sbr.rel (0) target = $region45
    $region44: #{psead_transformer_block.1} parent=1 // pred_region
      _
    $region45: #{psead_transformer_block.1} parent=1 // pred_fallthru
      _
    // Predicated region
    $region46: #{psead_transformer_block.1} parent=1 // pred_check
      _
    $region47: #{psead_transformer_block.1} parent=1 // pred_check_branch
      %42 = sbr.rel (0) target = $region49
    $region48: #{psead_transformer_block.1} parent=1 // pred_region
      _
    $region49: #{psead_transformer_block.1} parent=1 // pred_fallthru
      _
    // Predicated region
    $region50: #{psead_transformer_block.1} parent=1 // pred_check
      _
    $region51: #{psead_transformer_block.1} parent=1 // pred_check_branch
      %44 = sbr.rel (0) target = $region53
    $region52: #{psead_transformer_block.1} parent=1 // pred_region
      _
    $region53: #{psead_transformer_block.1} parent=1 // pred_fallthru
      _
    %v45 = vld [vmem:[%s0] sm:$0xff]
    %v46 = vld [vmem:[%s0 + $0x8] sm:$0xff]
    %v47 = vld [vmem:[%s5] sm:$0x1]
    %v48 = vld [vmem:[%s6] sm:$0x1]
    %vm49 = vcmask 261120
    %v50 = vsel %vm49, %v45, 0.0
    %51 = vadd.xlane.f32.xlu0 %v50
    %v52 = vpop.xlane.xlu0 %51
    %v53 = vsel %vm49, %v46, 0.0
    %54 = vadd.xlane.f32.xlu0 %v53
    %v55 = vpop.xlane.xlu0 %54
    %v56 = vrcp.pop 32.0
    %v57 = vmul.f32 %v52, %v56
    %v58 = vmul.f32 %v55, %v56
    %v59 = vsub.f32 %v45, %v57
    %v60 = vsub.f32 %v46, %v58
    %v61 = vmul.f32 %v59, %v59
    %v62 = vmul.f32 %v60, %v60
    %v63 = vsel %vm49, %v61, 0.0
    %64 = vadd.xlane.f32.xlu0 %v63
    %v65 = vpop.xlane.xlu0 %64
    %v66 = vsel %vm49, %v62, 0.0
    %67 = vadd.xlane.f32.xlu0 %v66
    %v68 = vpop.xlane.xlu0 %67
    %v69 = vmul.f32 %v65, %v56
    %v70 = vmul.f32 %v68, %v56
    %v71 = vadd.f32 %v69, 1e-05
    %v72 = vadd.f32 %v70, 1e-05
    %v73 = vrsqrt.pop %v71
    %v74 = vrsqrt.pop %v72
    %v75 = vmul.f32 %v59, %v73
    %v76 = vmul.f32 %v60, %v74
    %v78 = vlaneseq
    %v79 = vshrl.u32 %v78, 7
    %v80 = vsub.s32 0, %v79
    %v81 = vrot.slane %v47, %v80
    %v83 = vmul.f32 %v75, %v81
    %v84 = vmul.f32 %v76, %v81
    %v86 = vlaneseq
    %v87 = vshrl.u32 %v86, 7
    %v88 = vsub.s32 0, %v87
    %v89 = vrot.slane %v48, %v88
    %v91 = vadd.f32 %v83, %v89
    %v92 = vadd.f32 %v84, %v89
    %v93 = vld [vmem:[%s1] sm:$0xff]
    %v94 = vld [vmem:[%s1 + $0x8] sm:$0xff]
    %v95 = vld [vmem:[%s1 + $0x10] sm:$0xff]
    %v96 = vld [vmem:[%s1 + $0x18] sm:$0xff]
    %v97 = vld [vmem:[%s2] sm:$0x1]
    %v99 = vlaneseq
    %v100 = vshrl.u32 %v99, 7
    %v101 = vsub.s32 0, %v100
    %v102 = vrot.slane %v97, %v101
    %v105 = vsel %vm49, %v91, 0
    %v108 = vsel %vm49, %v92, 0
    %110 = vmatprep.subr.mxu0 0.0
    %111 = vmatpush1.msra.mxu0 %v93
    %112 = vmatprep.subr.mxu0 0.0
    %113 = vmatpush1.msra.mxu0 %v94
    %114 = vmatprep.subr.mxu0 0.0
    %115 = vmatpush1.msra.mxu0 %v95
    %116 = vmatprep.subr.mxu0 0.0
    %117 = vmatpush1.msra.mxu0 %v96
    %118 = vmatprep.subr.mxu0 0.0
    %119 = vmatpush1.msra.mxu0 0.0
    %120 = vmatprep.subr.mxu0 0.0
    %121 = vmatpush1.msra.mxu0 0.0
    %122 = vmatprep.subr.mxu0 0.0
    %123 = vmatpush1.msra.mxu0 0.0
    %124 = vmatprep.subr.mxu0 0.0
    %125 = vmatpush1.msra.mxu0 0.0
    %126 = vmatprep.subr.mxu0 0.0
    %127 = vmatpush1.msra.mxu0 0.0
    %128 = vmatprep.subr.mxu0 0.0
    %129 = vmatpush1.msra.mxu0 0.0
    %130 = vmatprep.subr.mxu0 0.0
    %131 = vmatpush1.msra.mxu0 0.0
    %132 = vmatprep.subr.mxu0 0.0
    %133 = vmatpush1.msra.mxu0 0.0
    %134 = vmatprep.subr.mxu0 0.0
    %135 = vmatpush1.msra.mxu0 0.0
    %136 = vmatprep.subr.mxu0 0.0
    %137 = vmatpush1.msra.mxu0 0.0
    %138 = vmatprep.subr.mxu0 0.0
    %139 = vmatpush1.msra.mxu0 0.0
    %140 = vmatprep.subr.mxu0 0.0
    %141 = vmatpush1.msra.mxu0 0.0
    %142 = vmatprep.subr.mxu0 0.0
    %143 = vmatpush1.msra.mxu0 0.0
    %144 = vmatprep.subr.mxu0 0.0
    %145 = vmatpush1.msra.mxu0 0.0
    %146 = vmatprep.subr.mxu0 0.0
    %147 = vmatpush1.msra.mxu0 0.0
    %148 = vmatprep.subr.mxu0 0.0
    %149 = vmatpush1.msra.mxu0 0.0
    %150 = vmatprep.subr.mxu0 0.0
    %151 = vmatpush1.msra.mxu0 0.0
    %152 = vmatprep.subr.mxu0 0.0
    %153 = vmatpush1.msra.mxu0 0.0
    %154 = vmatprep.subr.mxu0 0.0
    %155 = vmatpush1.msra.mxu0 0.0
    %156 = vmatprep.subr.mxu0 0.0
    %157 = vmatpush1.msra.mxu0 0.0
    %158 = vmatprep.subr.mxu0 0.0
    %159 = vmatpush1.msra.mxu0 0.0
    %160 = vmatprep.subr.mxu0 0.0
    %161 = vmatpush1.msra.mxu0 0.0
    %162 = vmatprep.subr.mxu0 0.0
    %163 = vmatpush1.msra.mxu0 0.0
    %164 = vmatprep.subr.mxu0 0.0
    %165 = vmatpush1.msra.mxu0 0.0
    %166 = vmatprep.subr.mxu0 0.0
    %167 = vmatpush1.msra.mxu0 0.0
    %168 = vmatprep.subr.mxu0 0.0
    %169 = vmatpush1.msra.mxu0 0.0
    %170 = vmatprep.subr.mxu0 0.0
    %171 = vmatpush1.msra.mxu0 0.0
    %172 = vmatprep.subr.mxu0 0.0
    %173 = vmatpush1.msra.mxu0 0.0
    %174 = vmatprep.mubr.f32.mxu0 0.0
    %175 = vmatmul.mubr.f32.gmra.mrb[0].mxu0 %v105
    %v176 = vpop.f32.mrb[0].mxu0
    %v177 = vadd.f32 %v102, %v176
    %v178 = vpop.f32.mrb[0].mxu0
    %179 = vmatprep.mubr.f32.mxu0 0.0
    %180 = vmatmul.mubr.f32.gmra.mrb[0].mxu0 %v108
    %v181 = vpop.f32.mrb[0].mxu0
    %v182 = vadd.f32 %v102, %v181
    %v183 = vpop.f32.mrb[0].mxu0
    %184 = vdwg.mxu0
    %186 = vrot.lane.b32.xlu0 %v177, 96
    %v187 = vpop.permute.xlu0 %186
    %vm188 = vcmask 64512
    %v189 = vsel %vm188, %v177, 0
    %v191 = vsel %vm188, %v187, 0
    %193 = vmatprep.subr.mxu0 0.0
    %194 = vmatpush1.xpose.msra.mxu0 %v191
    %195 = vmatprep.subr.mxu0 0.0
    %196 = vmatpush1.xpose.msra.mxu0 0.0
    %197 = vmatprep.subr.mxu0 0.0
    %198 = vmatpush1.xpose.msra.mxu0 0.0
    %199 = vmatprep.subr.mxu0 0.0
    %200 = vmatpush1.xpose.msra.mxu0 0.0
    %201 = vmatprep.subr.mxu0 0.0
    %202 = vmatpush1.xpose.msra.mxu0 0.0
    %203 = vmatprep.subr.mxu0 0.0
    %204 = vmatpush1.xpose.msra.mxu0 0.0
    %205 = vmatprep.subr.mxu0 0.0
    %206 = vmatpush1.xpose.msra.mxu0 0.0
    %207 = vmatprep.subr.mxu0 0.0
    %208 = vmatpush1.xpose.msra.mxu0 0.0
    %209 = vmatprep.subr.mxu0 0.0
    %210 = vmatpush1.xpose.msra.mxu0 0.0
    %211 = vmatprep.subr.mxu0 0.0
    %212 = vmatpush1.xpose.msra.mxu0 0.0
    %213 = vmatprep.subr.mxu0 0.0
    %214 = vmatpush1.xpose.msra.mxu0 0.0
    %215 = vmatprep.subr.mxu0 0.0
    %216 = vmatpush1.xpose.msra.mxu0 0.0
    %217 = vmatprep.subr.mxu0 0.0
    %218 = vmatpush1.xpose.msra.mxu0 0.0
    %219 = vmatprep.subr.mxu0 0.0
    %220 = vmatpush1.xpose.msra.mxu0 0.0
    %221 = vmatprep.subr.mxu0 0.0
    %222 = vmatpush1.xpose.msra.mxu0 0.0
    %223 = vmatprep.subr.mxu0 0.0
    %224 = vmatpush1.xpose.msra.mxu0 0.0
    %225 = vmatprep.subr.mxu0 0.0
    %226 = vmatpush1.xpose.msra.mxu0 0.0
    %227 = vmatprep.subr.mxu0 0.0
    %228 = vmatpush1.xpose.msra.mxu0 0.0
    %229 = vmatprep.subr.mxu0 0.0
    %230 = vmatpush1.xpose.msra.mxu0 0.0
    %231 = vmatprep.subr.mxu0 0.0
    %232 = vmatpush1.xpose.msra.mxu0 0.0
    %233 = vmatprep.subr.mxu0 0.0
    %234 = vmatpush1.xpose.msra.mxu0 0.0
    %235 = vmatprep.subr.mxu0 0.0
    %236 = vmatpush1.xpose.msra.mxu0 0.0
    %237 = vmatprep.subr.mxu0 0.0
    %238 = vmatpush1.xpose.msra.mxu0 0.0
    %239 = vmatprep.subr.mxu0 0.0
    %240 = vmatpush1.xpose.msra.mxu0 0.0
    %241 = vmatprep.subr.mxu0 0.0
    %242 = vmatpush1.xpose.msra.mxu0 0.0
    %243 = vmatprep.subr.mxu0 0.0
    %244 = vmatpush1.xpose.msra.mxu0 0.0
    %245 = vmatprep.subr.mxu0 0.0
    %246 = vmatpush1.xpose.msra.mxu0 0.0
    %247 = vmatprep.subr.mxu0 0.0
    %248 = vmatpush1.xpose.msra.mxu0 0.0
    %249 = vmatprep.subr.mxu0 0.0
    %250 = vmatpush1.xpose.msra.mxu0 0.0
    %251 = vmatprep.subr.mxu0 0.0
    %252 = vmatpush1.xpose.msra.mxu0 0.0
    %253 = vmatprep.subr.mxu0 0.0
    %254 = vmatpush1.xpose.msra.mxu0 0.0
    %255 = vmatprep.subr.mxu0 0.0
    %256 = vmatpush1.xpose.msra.mxu0 0.0
    %257 = vmatprep.mubr.f32.mxu0 0.0
    %258 = vmatmul.mubr.f32.gmra.mrb[0].mxu0 %v189
    %v259 = vpop.f32.mrb[0].mxu0
    %v260 = vadd.f32 0.0, %v259
    %v261 = vpop.f32.mrb[0].mxu0
    %262 = vdwg.mxu0
    %264 = vrot.lane.b32.xlu0 %v182, 96
    %v265 = vpop.permute.xlu0 %264
    %v266 = vsel %vm188, %v182, 0
    %v268 = vsel %vm188, %v265, 0
    %270 = vmatprep.subr.mxu0 0.0
    %271 = vmatpush1.xpose.msra.mxu0 %v268
    %272 = vmatprep.subr.mxu0 0.0
    %273 = vmatpush1.xpose.msra.mxu0 0.0
    %274 = vmatprep.subr.mxu0 0.0
    %275 = vmatpush1.xpose.msra.mxu0 0.0
    %276 = vmatprep.subr.mxu0 0.0
    %277 = vmatpush1.xpose.msra.mxu0 0.0
    %278 = vmatprep.subr.mxu0 0.0
    %279 = vmatpush1.xpose.msra.mxu0 0.0
    %280 = vmatprep.subr.mxu0 0.0
    %281 = vmatpush1.xpose.msra.mxu0 0.0
    %282 = vmatprep.subr.mxu0 0.0
    %283 = vmatpush1.xpose.msra.mxu0 0.0
    %284 = vmatprep.subr.mxu0 0.0
    %285 = vmatpush1.xpose.msra.mxu0 0.0
    %286 = vmatprep.subr.mxu0 0.0
    %287 = vmatpush1.xpose.msra.mxu0 0.0
    %288 = vmatprep.subr.mxu0 0.0
    %289 = vmatpush1.xpose.msra.mxu0 0.0
    %290 = vmatprep.subr.mxu0 0.0
    %291 = vmatpush1.xpose.msra.mxu0 0.0
    %292 = vmatprep.subr.mxu0 0.0
    %293 = vmatpush1.xpose.msra.mxu0 0.0
    %294 = vmatprep.subr.mxu0 0.0
    %295 = vmatpush1.xpose.msra.mxu0 0.0
    %296 = vmatprep.subr.mxu0 0.0
    %297 = vmatpush1.xpose.msra.mxu0 0.0
    %298 = vmatprep.subr.mxu0 0.0
    %299 = vmatpush1.xpose.msra.mxu0 0.0
    %300 = vmatprep.subr.mxu0 0.0
    %301 = vmatpush1.xpose.msra.mxu0 0.0
    %302 = vmatprep.subr.mxu0 0.0
    %303 = vmatpush1.xpose.msra.mxu0 0.0
    %304 = vmatprep.subr.mxu0 0.0
    %305 = vmatpush1.xpose.msra.mxu0 0.0
    %306 = vmatprep.subr.mxu0 0.0
    %307 = vmatpush1.xpose.msra.mxu0 0.0
    %308 = vmatprep.subr.mxu0 0.0
    %309 = vmatpush1.xpose.msra.mxu0 0.0
    %310 = vmatprep.subr.mxu0 0.0
    %311 = vmatpush1.xpose.msra.mxu0 0.0
    %312 = vmatprep.subr.mxu0 0.0
    %313 = vmatpush1.xpose.msra.mxu0 0.0
    %314 = vmatprep.subr.mxu0 0.0
    %315 = vmatpush1.xpose.msra.mxu0 0.0
    %316 = vmatprep.subr.mxu0 0.0
    %317 = vmatpush1.xpose.msra.mxu0 0.0
    %318 = vmatprep.subr.mxu0 0.0
    %319 = vmatpush1.xpose.msra.mxu0 0.0
    %320 = vmatprep.subr.mxu0 0.0
    %321 = vmatpush1.xpose.msra.mxu0 0.0
    %322 = vmatprep.subr.mxu0 0.0
    %323 = vmatpush1.xpose.msra.mxu0 0.0
    %324 = vmatprep.subr.mxu0 0.0
    %325 = vmatpush1.xpose.msra.mxu0 0.0
    %326 = vmatprep.subr.mxu0 0.0
    %327 = vmatpush1.xpose.msra.mxu0 0.0
    %328 = vmatprep.subr.mxu0 0.0
    %329 = vmatpush1.xpose.msra.mxu0 0.0
    %330 = vmatprep.subr.mxu0 0.0
    %331 = vmatpush1.xpose.msra.mxu0 0.0
    %332 = vmatprep.subr.mxu0 0.0
    %333 = vmatpush1.xpose.msra.mxu0 0.0
    %334 = vmatprep.mubr.f32.mxu0 0.0
    %335 = vmatmul.mubr.f32.gmra.mrb[0].mxu0 %v266
    %v336 = vpop.f32.mrb[0].mxu0
    %v337 = vadd.f32 0.0, %v336
    %v338 = vpop.f32.mrb[0].mxu0
    %339 = vdwg.mxu0
    %v340 = vsel %vm188, %v260, -inf
    %341 = vmax.xlane.f32.xlu0 %v340
    %v342 = vpop.xlane.xlu0 %341
    %v343 = vsel %vm188, %v337, -inf
    %344 = vmax.xlane.f32.xlu0 %v343
    %v345 = vpop.xlane.xlu0 %344
    %v346 = vsub.f32 %v260, %v342
    %v347 = vsub.f32 %v337, %v345
    %v348 = vmul.f32 %v346, 1.442695
    %v349 = vpow.pop %v348
    %v350 = vmul.f32 %v347, 1.442695
    %v351 = vpow.pop %v350
    %v352 = vsel %vm188, %v349, 0.0
    %353 = vadd.xlane.f32.xlu0 %v352
    %v354 = vpop.xlane.xlu0 %353
    %v355 = vsel %vm188, %v351, 0.0
    %356 = vadd.xlane.f32.xlu0 %v355
    %v357 = vpop.xlane.xlu0 %356
    %v358 = vrcp.pop %v354
    %v359 = vrcp.pop %v357
    %v360 = vmul.f32 %v349, %v358
    %v361 = vmul.f32 %v351, %v359
    %362 = vrot.lane.b32.xlu0 %v177, 64
    %v363 = vpop.permute.xlu0 %362
    %v366 = vsel %vm188, %v360, 0
    %368 = vmatprep.subr.mxu0 0.0
    %369 = vmatpush1.msra.mxu0 %v363
    %370 = vmatprep.subr.mxu0 0.0
    %371 = vmatpush1.msra.mxu0 0.0
    %372 = vmatprep.subr.mxu0 0.0
    %373 = vmatpush1.msra.mxu0 0.0
    %374 = vmatprep.subr.mxu0 0.0
    %375 = vmatpush1.msra.mxu0 0.0
    %376 = vmatprep.subr.mxu0 0.0
    %377 = vmatpush1.msra.mxu0 0.0
    %378 = vmatprep.subr.mxu0 0.0
    %379 = vmatpush1.msra.mxu0 0.0
    %380 = vmatprep.subr.mxu0 0.0
    %381 = vmatpush1.msra.mxu0 0.0
    %382 = vmatprep.subr.mxu0 0.0
    %383 = vmatpush1.msra.mxu0 0.0
    %384 = vmatprep.subr.mxu0 0.0
    %385 = vmatpush1.msra.mxu0 0.0
    %386 = vmatprep.subr.mxu0 0.0
    %387 = vmatpush1.msra.mxu0 0.0
    %388 = vmatprep.subr.mxu0 0.0
    %389 = vmatpush1.msra.mxu0 0.0
    %390 = vmatprep.subr.mxu0 0.0
    %391 = vmatpush1.msra.mxu0 0.0
    %392 = vmatprep.subr.mxu0 0.0
    %393 = vmatpush1.msra.mxu0 0.0
    %394 = vmatprep.subr.mxu0 0.0
    %395 = vmatpush1.msra.mxu0 0.0
    %396 = vmatprep.subr.mxu0 0.0
    %397 = vmatpush1.msra.mxu0 0.0
    %398 = vmatprep.subr.mxu0 0.0
    %399 = vmatpush1.msra.mxu0 0.0
    %400 = vmatprep.subr.mxu0 0.0
    %401 = vmatpush1.msra.mxu0 0.0
    %402 = vmatprep.subr.mxu0 0.0
    %403 = vmatpush1.msra.mxu0 0.0
    %404 = vmatprep.subr.mxu0 0.0
    %405 = vmatpush1.msra.mxu0 0.0
    %406 = vmatprep.subr.mxu0 0.0
    %407 = vmatpush1.msra.mxu0 0.0
    %408 = vmatprep.subr.mxu0 0.0
    %409 = vmatpush1.msra.mxu0 0.0
    %410 = vmatprep.subr.mxu0 0.0
    %411 = vmatpush1.msra.mxu0 0.0
    %412 = vmatprep.subr.mxu0 0.0
    %413 = vmatpush1.msra.mxu0 0.0
    %414 = vmatprep.subr.mxu0 0.0
    %415 = vmatpush1.msra.mxu0 0.0
    %416 = vmatprep.subr.mxu0 0.0
    %417 = vmatpush1.msra.mxu0 0.0
    %418 = vmatprep.subr.mxu0 0.0
    %419 = vmatpush1.msra.mxu0 0.0
    %420 = vmatprep.subr.mxu0 0.0
    %421 = vmatpush1.msra.mxu0 0.0
    %422 = vmatprep.subr.mxu0 0.0
    %423 = vmatpush1.msra.mxu0 0.0
    %424 = vmatprep.subr.mxu0 0.0
    %425 = vmatpush1.msra.mxu0 0.0
    %426 = vmatprep.subr.mxu0 0.0
    %427 = vmatpush1.msra.mxu0 0.0
    %428 = vmatprep.subr.mxu0 0.0
    %429 = vmatpush1.msra.mxu0 0.0
    %430 = vmatprep.subr.mxu0 0.0
    %431 = vmatpush1.msra.mxu0 0.0
    %432 = vmatprep.mubr.f32.mxu0 0.0
    %433 = vmatmul.mubr.f32.gmra.mrb[0].mxu0 %v366
    %v434 = vpop.f32.mrb[0].mxu0
    %v435 = vadd.f32 0.0, %v434
    %v436 = vpop.f32.mrb[0].mxu0
    %437 = vdwg.mxu0
    %438 = vrot.lane.b32.xlu0 %v182, 64
    %v439 = vpop.permute.xlu0 %438
    %v442 = vsel %vm188, %v361, 0
    %444 = vmatprep.subr.mxu0 0.0
    %445 = vmatpush1.msra.mxu0 %v439
    %446 = vmatprep.subr.mxu0 0.0
    %447 = vmatpush1.msra.mxu0 0.0
    %448 = vmatprep.subr.mxu0 0.0
    %449 = vmatpush1.msra.mxu0 0.0
    %450 = vmatprep.subr.mxu0 0.0
    %451 = vmatpush1.msra.mxu0 0.0
    %452 = vmatprep.subr.mxu0 0.0
    %453 = vmatpush1.msra.mxu0 0.0
    %454 = vmatprep.subr.mxu0 0.0
    %455 = vmatpush1.msra.mxu0 0.0
    %456 = vmatprep.subr.mxu0 0.0
    %457 = vmatpush1.msra.mxu0 0.0
    %458 = vmatprep.subr.mxu0 0.0
    %459 = vmatpush1.msra.mxu0 0.0
    %460 = vmatprep.subr.mxu0 0.0
    %461 = vmatpush1.msra.mxu0 0.0
    %462 = vmatprep.subr.mxu0 0.0
    %463 = vmatpush1.msra.mxu0 0.0
    %464 = vmatprep.subr.mxu0 0.0
    %465 = vmatpush1.msra.mxu0 0.0
    %466 = vmatprep.subr.mxu0 0.0
    %467 = vmatpush1.msra.mxu0 0.0
    %468 = vmatprep.subr.mxu0 0.0
    %469 = vmatpush1.msra.mxu0 0.0
    %470 = vmatprep.subr.mxu0 0.0
    %471 = vmatpush1.msra.mxu0 0.0
    %472 = vmatprep.subr.mxu0 0.0
    %473 = vmatpush1.msra.mxu0 0.0
    %474 = vmatprep.subr.mxu0 0.0
    %475 = vmatpush1.msra.mxu0 0.0
    %476 = vmatprep.subr.mxu0 0.0
    %477 = vmatpush1.msra.mxu0 0.0
    %478 = vmatprep.subr.mxu0 0.0
    %479 = vmatpush1.msra.mxu0 0.0
    %480 = vmatprep.subr.mxu0 0.0
    %481 = vmatpush1.msra.mxu0 0.0
    %482 = vmatprep.subr.mxu0 0.0
    %483 = vmatpush1.msra.mxu0 0.0
    %484 = vmatprep.subr.mxu0 0.0
    %485 = vmatpush1.msra.mxu0 0.0
    %486 = vmatprep.subr.mxu0 0.0
    %487 = vmatpush1.msra.mxu0 0.0
    %488 = vmatprep.subr.mxu0 0.0
    %489 = vmatpush1.msra.mxu0 0.0
    %490 = vmatprep.subr.mxu0 0.0
    %491 = vmatpush1.msra.mxu0 0.0
    %492 = vmatprep.subr.mxu0 0.0
    %493 = vmatpush1.msra.mxu0 0.0
    %494 = vmatprep.subr.mxu0 0.0
    %495 = vmatpush1.msra.mxu0 0.0
    %496 = vmatprep.subr.mxu0 0.0
    %497 = vmatpush1.msra.mxu0 0.0
    %498 = vmatprep.subr.mxu0 0.0
    %499 = vmatpush1.msra.mxu0 0.0
    %500 = vmatprep.subr.mxu0 0.0
    %501 = vmatpush1.msra.mxu0 0.0
    %502 = vmatprep.subr.mxu0 0.0
    %503 = vmatpush1.msra.mxu0 0.0
    %504 = vmatprep.subr.mxu0 0.0
    %505 = vmatpush1.msra.mxu0 0.0
    %506 = vmatprep.subr.mxu0 0.0
    %507 = vmatpush1.msra.mxu0 0.0
    %508 = vmatprep.mubr.f32.mxu0 0.0
    %509 = vmatmul.mubr.f32.gmra.mrb[0].mxu0 %v442
    %v510 = vpop.f32.mrb[0].mxu0
    %v511 = vadd.f32 0.0, %v510
    %v512 = vpop.f32.mrb[0].mxu0
    %513 = vdwg.mxu0
    %514 = vst.msk [vmem:[#allocation2] sm:$0xff] %vm188, %v435
    %515 = vst.msk [vmem:[#allocation2 + $0x8] sm:$0xff] %vm188, %v511
    %516 = vrot.lane.b32.xlu0 %v177, 120
    %v517 = vpop.permute.xlu0 %516
    %518 = vrot.lane.b32.xlu0 %v177, 88
    %v519 = vpop.permute.xlu0 %518
    %v520 = vsel %vm188, %v517, 0
    %v522 = vsel %vm188, %v519, 0
    %524 = vmatprep.subr.mxu0 0.0
    %525 = vmatpush1.xpose.msra.mxu0 %v522
    %526 = vmatprep.subr.mxu0 0.0
    %527 = vmatpush1.xpose.msra.mxu0 0.0
    %528 = vmatprep.subr.mxu0 0.0
    %529 = vmatpush1.xpose.msra.mxu0 0.0
    %530 = vmatprep.subr.mxu0 0.0
    %531 = vmatpush1.xpose.msra.mxu0 0.0
    %532 = vmatprep.subr.mxu0 0.0
    %533 = vmatpush1.xpose.msra.mxu0 0.0
    %534 = vmatprep.subr.mxu0 0.0
    %535 = vmatpush1.xpose.msra.mxu0 0.0
    %536 = vmatprep.subr.mxu0 0.0
    %537 = vmatpush1.xpose.msra.mxu0 0.0
    %538 = vmatprep.subr.mxu0 0.0
    %539 = vmatpush1.xpose.msra.mxu0 0.0
    %540 = vmatprep.subr.mxu0 0.0
    %541 = vmatpush1.xpose.msra.mxu0 0.0
    %542 = vmatprep.subr.mxu0 0.0
    %543 = vmatpush1.xpose.msra.mxu0 0.0
    %544 = vmatprep.subr.mxu0 0.0
    %545 = vmatpush1.xpose.msra.mxu0 0.0
    %546 = vmatprep.subr.mxu0 0.0
    %547 = vmatpush1.xpose.msra.mxu0 0.0
    %548 = vmatprep.subr.mxu0 0.0
    %549 = vmatpush1.xpose.msra.mxu0 0.0
    %550 = vmatprep.subr.mxu0 0.0
    %551 = vmatpush1.xpose.msra.mxu0 0.0
    %552 = vmatprep.subr.mxu0 0.0
    %553 = vmatpush1.xpose.msra.mxu0 0.0
    %554 = vmatprep.subr.mxu0 0.0
    %555 = vmatpush1.xpose.msra.mxu0 0.0
    %556 = vmatprep.subr.mxu0 0.0
    %557 = vmatpush1.xpose.msra.mxu0 0.0
    %558 = vmatprep.subr.mxu0 0.0
    %559 = vmatpush1.xpose.msra.mxu0 0.0
    %560 = vmatprep.subr.mxu0 0.0
    %561 = vmatpush1.xpose.msra.mxu0 0.0
    %562 = vmatprep.subr.mxu0 0.0
    %563 = vmatpush1.xpose.msra.mxu0 0.0
    %564 = vmatprep.subr.mxu0 0.0
    %565 = vmatpush1.xpose.msra.mxu0 0.0
    %566 = vmatprep.subr.mxu0 0.0
    %567 = vmatpush1.xpose.msra.mxu0 0.0
    %568 = vmatprep.subr.mxu0 0.0
    %569 = vmatpush1.xpose.msra.mxu0 0.0
    %570 = vmatprep.subr.mxu0 0.0
    %571 = vmatpush1.xpose.msra.mxu0 0.0
    %572 = vmatprep.subr.mxu0 0.0
    %573 = vmatpush1.xpose.msra.mxu0 0.0
    %574 = vmatprep.subr.mxu0 0.0
    %575 = vmatpush1.xpose.msra.mxu0 0.0
    %576 = vmatprep.subr.mxu0 0.0
    %577 = vmatpush1.xpose.msra.mxu0 0.0
    %578 = vmatprep.subr.mxu0 0.0
    %579 = vmatpush1.xpose.msra.mxu0 0.0
    %580 = vmatprep.subr.mxu0 0.0
    %581 = vmatpush1.xpose.msra.mxu0 0.0
    %582 = vmatprep.subr.mxu0 0.0
    %583 = vmatpush1.xpose.msra.mxu0 0.0
    %584 = vmatprep.subr.mxu0 0.0
    %585 = vmatpush1.xpose.msra.mxu0 0.0
    %586 = vmatprep.subr.mxu0 0.0
    %587 = vmatpush1.xpose.msra.mxu0 0.0
    %588 = vmatprep.mubr.f32.mxu0 0.0
    %589 = vmatmul.mubr.f32.gmra.mrb[0].mxu0 %v520
    %v590 = vpop.f32.mrb[0].mxu0
    %v591 = vadd.f32 0.0, %v590
    %v592 = vpop.f32.mrb[0].mxu0
    %593 = vdwg.mxu0
    %594 = vrot.lane.b32.xlu0 %v182, 120
    %v595 = vpop.permute.xlu0 %594
    %596 = vrot.lane.b32.xlu0 %v182, 88
    %v597 = vpop.permute.xlu0 %596
    %v598 = vsel %vm188, %v595, 0
    %v600 = vsel %vm188, %v597, 0
    %602 = vmatprep.subr.mxu0 0.0
    %603 = vmatpush1.xpose.msra.mxu0 %v600
    %604 = vmatprep.subr.mxu0 0.0
    %605 = vmatpush1.xpose.msra.mxu0 0.0
    %606 = vmatprep.subr.mxu0 0.0
    %607 = vmatpush1.xpose.msra.mxu0 0.0
    %608 = vmatprep.subr.mxu0 0.0
    %609 = vmatpush1.xpose.msra.mxu0 0.0
    %610 = vmatprep.subr.mxu0 0.0
    %611 = vmatpush1.xpose.msra.mxu0 0.0
    %612 = vmatprep.subr.mxu0 0.0
    %613 = vmatpush1.xpose.msra.mxu0 0.0
    %614 = vmatprep.subr.mxu0 0.0
    %615 = vmatpush1.xpose.msra.mxu0 0.0
    %616 = vmatprep.subr.mxu0 0.0
    %617 = vmatpush1.xpose.msra.mxu0 0.0
    %618 = vmatprep.subr.mxu0 0.0
    %619 = vmatpush1.xpose.msra.mxu0 0.0
    %620 = vmatprep.subr.mxu0 0.0
    %621 = vmatpush1.xpose.msra.mxu0 0.0
    %622 = vmatprep.subr.mxu0 0.0
    %623 = vmatpush1.xpose.msra.mxu0 0.0
    %624 = vmatprep.subr.mxu0 0.0
    %625 = vmatpush1.xpose.msra.mxu0 0.0
    %626 = vmatprep.subr.mxu0 0.0
    %627 = vmatpush1.xpose.msra.mxu0 0.0
    %628 = vmatprep.subr.mxu0 0.0
    %629 = vmatpush1.xpose.msra.mxu0 0.0
    %630 = vmatprep.subr.mxu0 0.0
    %631 = vmatpush1.xpose.msra.mxu0 0.0
    %632 = vmatprep.subr.mxu0 0.0
    %633 = vmatpush1.xpose.msra.mxu0 0.0
    %634 = vmatprep.subr.mxu0 0.0
    %635 = vmatpush1.xpose.msra.mxu0 0.0
    %636 = vmatprep.subr.mxu0 0.0
    %637 = vmatpush1.xpose.msra.mxu0 0.0
    %638 = vmatprep.subr.mxu0 0.0
    %639 = vmatpush1.xpose.msra.mxu0 0.0
    %640 = vmatprep.subr.mxu0 0.0
    %641 = vmatpush1.xpose.msra.mxu0 0.0
    %642 = vmatprep.subr.mxu0 0.0
    %643 = vmatpush1.xpose.msra.mxu0 0.0
    %644 = vmatprep.subr.mxu0 0.0
    %645 = vmatpush1.xpose.msra.mxu0 0.0
    %646 = vmatprep.subr.mxu0 0.0
    %647 = vmatpush1.xpose.msra.mxu0 0.0
    %648 = vmatprep.subr.mxu0 0.0
    %649 = vmatpush1.xpose.msra.mxu0 0.0
    %650 = vmatprep.subr.mxu0 0.0
    %651 = vmatpush1.xpose.msra.mxu0 0.0
    %652 = vmatprep.subr.mxu0 0.0
    %653 = vmatpush1.xpose.msra.mxu0 0.0
    %654 = vmatprep.subr.mxu0 0.0
    %655 = vmatpush1.xpose.msra.mxu0 0.0
    %656 = vmatprep.subr.mxu0 0.0
    %657 = vmatpush1.xpose.msra.mxu0 0.0
    %658 = vmatprep.subr.mxu0 0.0
    %659 = vmatpush1.xpose.msra.mxu0 0.0
    %660 = vmatprep.subr.mxu0 0.0
    %661 = vmatpush1.xpose.msra.mxu0 0.0
    %662 = vmatprep.subr.mxu0 0.0
    %663 = vmatpush1.xpose.msra.mxu0 0.0
    %664 = vmatprep.subr.mxu0 0.0
    %665 = vmatpush1.xpose.msra.mxu0 0.0
    %666 = vmatprep.mubr.f32.mxu0 0.0
    %667 = vmatmul.mubr.f32.gmra.mrb[0].mxu0 %v598
    %v668 = vpop.f32.mrb[0].mxu0
    %v669 = vadd.f32 0.0, %v668
    %v670 = vpop.f32.mrb[0].mxu0
    %671 = vdwg.mxu0
    %v672 = vsel %vm188, %v591, -inf
    %673 = vmax.xlane.f32.xlu0 %v672
    %v674 = vpop.xlane.xlu0 %673
    %v675 = vsel %vm188, %v669, -inf
    %676 = vmax.xlane.f32.xlu0 %v675
    %v677 = vpop.xlane.xlu0 %676
    %v678 = vsub.f32 %v591, %v674
    %v679 = vsub.f32 %v669, %v677
    %v680 = vmul.f32 %v678, 1.442695
    %v681 = vpow.pop %v680
    %v682 = vmul.f32 %v679, 1.442695
    %v683 = vpow.pop %v682
    %v684 = vsel %vm188, %v681, 0.0
    %685 = vadd.xlane.f32.xlu0 %v684
    %v686 = vpop.xlane.xlu0 %685
    %v687 = vsel %vm188, %v683, 0.0
    %688 = vadd.xlane.f32.xlu0 %v687
    %v689 = vpop.xlane.xlu0 %688
    %v690 = vrcp.pop %v686
    %v691 = vrcp.pop %v689
    %v692 = vmul.f32 %v681, %v690
    %v693 = vmul.f32 %v683, %v691
    %694 = vrot.lane.b32.xlu0 %v177, 56
    %v695 = vpop.permute.xlu0 %694
    %v698 = vsel %vm188, %v692, 0
    %700 = vmatprep.subr.mxu0 0.0
    %701 = vmatpush1.msra.mxu0 %v695
    %702 = vmatprep.subr.mxu0 0.0
    %703 = vmatpush1.msra.mxu0 0.0
    %704 = vmatprep.subr.mxu0 0.0
    %705 = vmatpush1.msra.mxu0 0.0
    %706 = vmatprep.subr.mxu0 0.0
    %707 = vmatpush1.msra.mxu0 0.0
    %708 = vmatprep.subr.mxu0 0.0
    %709 = vmatpush1.msra.mxu0 0.0
    %710 = vmatprep.subr.mxu0 0.0
    %711 = vmatpush1.msra.mxu0 0.0
    %712 = vmatprep.subr.mxu0 0.0
    %713 = vmatpush1.msra.mxu0 0.0
    %714 = vmatprep.subr.mxu0 0.0
    %715 = vmatpush1.msra.mxu0 0.0
    %716 = vmatprep.subr.mxu0 0.0
    %717 = vmatpush1.msra.mxu0 0.0
    %718 = vmatprep.subr.mxu0 0.0
    %719 = vmatpush1.msra.mxu0 0.0
    %720 = vmatprep.subr.mxu0 0.0
    %721 = vmatpush1.msra.mxu0 0.0
    %722 = vmatprep.subr.mxu0 0.0
    %723 = vmatpush1.msra.mxu0 0.0
    %724 = vmatprep.subr.mxu0 0.0
    %725 = vmatpush1.msra.mxu0 0.0
    %726 = vmatprep.subr.mxu0 0.0
    %727 = vmatpush1.msra.mxu0 0.0
    %728 = vmatprep.subr.mxu0 0.0
    %729 = vmatpush1.msra.mxu0 0.0
    %730 = vmatprep.subr.mxu0 0.0
    %731 = vmatpush1.msra.mxu0 0.0
    %732 = vmatprep.subr.mxu0 0.0
    %733 = vmatpush1.msra.mxu0 0.0
    %734 = vmatprep.subr.mxu0 0.0
    %735 = vmatpush1.msra.mxu0 0.0
    %736 = vmatprep.subr.mxu0 0.0
    %737 = vmatpush1.msra.mxu0 0.0
    %738 = vmatprep.subr.mxu0 0.0
    %739 = vmatpush1.msra.mxu0 0.0
    %740 = vmatprep.subr.mxu0 0.0
    %741 = vmatpush1.msra.mxu0 0.0
    %742 = vmatprep.subr.mxu0 0.0
    %743 = vmatpush1.msra.mxu0 0.0
    %744 = vmatprep.subr.mxu0 0.0
    %745 = vmatpush1.msra.mxu0 0.0
    %746 = vmatprep.subr.mxu0 0.0
    %747 = vmatpush1.msra.mxu0 0.0
    %748 = vmatprep.subr.mxu0 0.0
    %749 = vmatpush1.msra.mxu0 0.0
    %750 = vmatprep.subr.mxu0 0.0
    %751 = vmatpush1.msra.mxu0 0.0
    %752 = vmatprep.subr.mxu0 0.0
    %753 = vmatpush1.msra.mxu0 0.0
    %754 = vmatprep.subr.mxu0 0.0
    %755 = vmatpush1.msra.mxu0 0.0
    %756 = vmatprep.subr.mxu0 0.0
    %757 = vmatpush1.msra.mxu0 0.0
    %758 = vmatprep.subr.mxu0 0.0
    %759 = vmatpush1.msra.mxu0 0.0
    %760 = vmatprep.subr.mxu0 0.0
    %761 = vmatpush1.msra.mxu0 0.0
    %762 = vmatprep.subr.mxu0 0.0
    %763 = vmatpush1.msra.mxu0 0.0
    %764 = vmatprep.mubr.f32.mxu0 0.0
    %765 = vmatmul.mubr.f32.gmra.mrb[0].mxu0 %v698
    %v766 = vpop.f32.mrb[0].mxu0
    %v767 = vadd.f32 0.0, %v766
    %v768 = vpop.f32.mrb[0].mxu0
    %769 = vdwg.mxu0
    %770 = vrot.lane.b32.xlu0 %v182, 56
    %v771 = vpop.permute.xlu0 %770
    %v774 = vsel %vm188, %v693, 0
    %776 = vmatprep.subr.mxu0 0.0
    %777 = vmatpush1.msra.mxu0 %v771
    %778 = vmatprep.subr.mxu0 0.0
    %779 = vmatpush1.msra.mxu0 0.0
    %780 = vmatprep.subr.mxu0 0.0
    %781 = vmatpush1.msra.mxu0 0.0
    %782 = vmatprep.subr.mxu0 0.0
    %783 = vmatpush1.msra.mxu0 0.0
    %784 = vmatprep.subr.mxu0 0.0
    %785 = vmatpush1.msra.mxu0 0.0
    %786 = vmatprep.subr.mxu0 0.0
    %787 = vmatpush1.msra.mxu0 0.0
    %788 = vmatprep.subr.mxu0 0.0
    %789 = vmatpush1.msra.mxu0 0.0
    %790 = vmatprep.subr.mxu0 0.0
    %791 = vmatpush1.msra.mxu0 0.0
    %792 = vmatprep.subr.mxu0 0.0
    %793 = vmatpush1.msra.mxu0 0.0
    %794 = vmatprep.subr.mxu0 0.0
    %795 = vmatpush1.msra.mxu0 0.0
    %796 = vmatprep.subr.mxu0 0.0
    %797 = vmatpush1.msra.mxu0 0.0
    %798 = vmatprep.subr.mxu0 0.0
    %799 = vmatpush1.msra.mxu0 0.0
    %800 = vmatprep.subr.mxu0 0.0
    %801 = vmatpush1.msra.mxu0 0.0
    %802 = vmatprep.subr.mxu0 0.0
    %803 = vmatpush1.msra.mxu0 0.0
    %804 = vmatprep.subr.mxu0 0.0
    %805 = vmatpush1.msra.mxu0 0.0
    %806 = vmatprep.subr.mxu0 0.0
    %807 = vmatpush1.msra.mxu0 0.0
    %808 = vmatprep.subr.mxu0 0.0
    %809 = vmatpush1.msra.mxu0 0.0
    %810 = vmatprep.subr.mxu0 0.0
    %811 = vmatpush1.msra.mxu0 0.0
    %812 = vmatprep.subr.mxu0 0.0
    %813 = vmatpush1.msra.mxu0 0.0
    %814 = vmatprep.subr.mxu0 0.0
    %815 = vmatpush1.msra.mxu0 0.0
    %816 = vmatprep.subr.mxu0 0.0
    %817 = vmatpush1.msra.mxu0 0.0
    %818 = vmatprep.subr.mxu0 0.0
    %819 = vmatpush1.msra.mxu0 0.0
    %820 = vmatprep.subr.mxu0 0.0
    %821 = vmatpush1.msra.mxu0 0.0
    %822 = vmatprep.subr.mxu0 0.0
    %823 = vmatpush1.msra.mxu0 0.0
    %824 = vmatprep.subr.mxu0 0.0
    %825 = vmatpush1.msra.mxu0 0.0
    %826 = vmatprep.subr.mxu0 0.0
    %827 = vmatpush1.msra.mxu0 0.0
    %828 = vmatprep.subr.mxu0 0.0
    %829 = vmatpush1.msra.mxu0 0.0
    %830 = vmatprep.subr.mxu0 0.0
    %831 = vmatpush1.msra.mxu0 0.0
    %832 = vmatprep.subr.mxu0 0.0
    %833 = vmatpush1.msra.mxu0 0.0
    %834 = vmatprep.subr.mxu0 0.0
    %835 = vmatpush1.msra.mxu0 0.0
    %836 = vmatprep.subr.mxu0 0.0
    %837 = vmatpush1.msra.mxu0 0.0
    %838 = vmatprep.subr.mxu0 0.0
    %839 = vmatpush1.msra.mxu0 0.0
    %840 = vmatprep.mubr.f32.mxu0 0.0
    %841 = vmatmul.mubr.f32.gmra.mrb[0].mxu0 %v774
    %v842 = vpop.f32.mrb[0].mxu0
    %v843 = vadd.f32 0.0, %v842
    %v844 = vpop.f32.mrb[0].mxu0
    %845 = vdwg.mxu0
    %848 = vrot.lane.b32.xlu0 %v767, 8
    %v849 = vpop.permute.xlu0 %848
    %850 = vrot.lane.b32.xlu0 %v843, 8
    %v851 = vpop.permute.xlu0 %850
    %vm854 = vcmask 130112
    %855 = vst.msk [vmem:[#allocation2] sm:$0xff] %vm854, %v849
    %856 = vst.msk [vmem:[#allocation2 + $0x8] sm:$0xff] %vm854, %v851
    %857 = vrot.lane.b32.xlu0 %v177, 112
    %v858 = vpop.permute.xlu0 %857
    %859 = vrot.lane.b32.xlu0 %v177, 80
    %v860 = vpop.permute.xlu0 %859
    %v861 = vsel %vm188, %v858, 0
    %v863 = vsel %vm188, %v860, 0
    %865 = vmatprep.subr.mxu0 0.0
    %866 = vmatpush1.xpose.msra.mxu0 %v863
    %867 = vmatprep.subr.mxu0 0.0
    %868 = vmatpush1.xpose.msra.mxu0 0.0
    %869 = vmatprep.subr.mxu0 0.0
    %870 = vmatpush1.xpose.msra.mxu0 0.0
    %871 = vmatprep.subr.mxu0 0.0
    %872 = vmatpush1.xpose.msra.mxu0 0.0
    %873 = vmatprep.subr.mxu0 0.0
    %874 = vmatpush1.xpose.msra.mxu0 0.0
    %875 = vmatprep.subr.mxu0 0.0
    %876 = vmatpush1.xpose.msra.mxu0 0.0
    %877 = vmatprep.subr.mxu0 0.0
    %878 = vmatpush1.xpose.msra.mxu0 0.0
    %879 = vmatprep.subr.mxu0 0.0
    %880 = vmatpush1.xpose.msra.mxu0 0.0
    %881 = vmatprep.subr.mxu0 0.0
    %882 = vmatpush1.xpose.msra.mxu0 0.0
    %883 = vmatprep.subr.mxu0 0.0
    %884 = vmatpush1.xpose.msra.mxu0 0.0
    %885 = vmatprep.subr.mxu0 0.0
    %886 = vmatpush1.xpose.msra.mxu0 0.0
    %887 = vmatprep.subr.mxu0 0.0
    %888 = vmatpush1.xpose.msra.mxu0 0.0
    %889 = vmatprep.subr.mxu0 0.0
    %890 = vmatpush1.xpose.msra.mxu0 0.0
    %891 = vmatprep.subr.mxu0 0.0
    %892 = vmatpush1.xpose.msra.mxu0 0.0
    %893 = vmatprep.subr.mxu0 0.0
    %894 = vmatpush1.xpose.msra.mxu0 0.0
    %895 = vmatprep.subr.mxu0 0.0
    %896 = vmatpush1.xpose.msra.mxu0 0.0
    %897 = vmatprep.subr.mxu0 0.0
    %898 = vmatpush1.xpose.msra.mxu0 0.0
    %899 = vmatprep.subr.mxu0 0.0
    %900 = vmatpush1.xpose.msra.mxu0 0.0
    %901 = vmatprep.subr.mxu0 0.0
    %902 = vmatpush1.xpose.msra.mxu0 0.0
    %903 = vmatprep.subr.mxu0 0.0
    %904 = vmatpush1.xpose.msra.mxu0 0.0
    %905 = vmatprep.subr.mxu0 0.0
    %906 = vmatpush1.xpose.msra.mxu0 0.0
    %907 = vmatprep.subr.mxu0 0.0
    %908 = vmatpush1.xpose.msra.mxu0 0.0
    %909 = vmatprep.subr.mxu0 0.0
    %910 = vmatpush1.xpose.msra.mxu0 0.0
    %911 = vmatprep.subr.mxu0 0.0
    %912 = vmatpush1.xpose.msra.mxu0 0.0
    %913 = vmatprep.subr.mxu0 0.0
    %914 = vmatpush1.xpose.msra.mxu0 0.0
    %915 = vmatprep.subr.mxu0 0.0
    %916 = vmatpush1.xpose.msra.mxu0 0.0
    %917 = vmatprep.subr.mxu0 0.0
    %918 = vmatpush1.xpose.msra.mxu0 0.0
    %919 = vmatprep.subr.mxu0 0.0
    %920 = vmatpush1.xpose.msra.mxu0 0.0
    %921 = vmatprep.subr.mxu0 0.0
    %922 = vmatpush1.xpose.msra.mxu0 0.0
    %923 = vmatprep.subr.mxu0 0.0
    %924 = vmatpush1.xpose.msra.mxu0 0.0
    %925 = vmatprep.subr.mxu0 0.0
    %926 = vmatpush1.xpose.msra.mxu0 0.0
    %927 = vmatprep.subr.mxu0 0.0
    %928 = vmatpush1.xpose.msra.mxu0 0.0
    %929 = vmatprep.mubr.f32.mxu0 0.0
    %930 = vmatmul.mubr.f32.gmra.mrb[0].mxu0 %v861
    %v931 = vpop.f32.mrb[0].mxu0
    %v932 = vadd.f32 0.0, %v931
    %v933 = vpop.f32.mrb[0].mxu0
    %934 = vdwg.mxu0
    %935 = vrot.lane.b32.xlu0 %v182, 112
    %v936 = vpop.permute.xlu0 %935
    %937 = vrot.lane.b32.xlu0 %v182, 80
    %v938 = vpop.permute.xlu0 %937
    %v939 = vsel %vm188, %v936, 0
    %v941 = vsel %vm188, %v938, 0
    %943 = vmatprep.subr.mxu0 0.0
    %944 = vmatpush1.xpose.msra.mxu0 %v941
    %945 = vmatprep.subr.mxu0 0.0
    %946 = vmatpush1.xpose.msra.mxu0 0.0
    %947 = vmatprep.subr.mxu0 0.0
    %948 = vmatpush1.xpose.msra.mxu0 0.0
    %949 = vmatprep.subr.mxu0 0.0
    %950 = vmatpush1.xpose.msra.mxu0 0.0
    %951 = vmatprep.subr.mxu0 0.0
    %952 = vmatpush1.xpose.msra.mxu0 0.0
    %953 = vmatprep.subr.mxu0 0.0
    %954 = vmatpush1.xpose.msra.mxu0 0.0
    %955 = vmatprep.subr.mxu0 0.0
    %956 = vmatpush1.xpose.msra.mxu0 0.0
    %957 = vmatprep.subr.mxu0 0.0
    %958 = vmatpush1.xpose.msra.mxu0 0.0
    %959 = vmatprep.subr.mxu0 0.0
    %960 = vmatpush1.xpose.msra.mxu0 0.0
    %961 = vmatprep.subr.mxu0 0.0
    %962 = vmatpush1.xpose.msra.mxu0 0.0
    %963 = vmatprep.subr.mxu0 0.0
    %964 = vmatpush1.xpose.msra.mxu0 0.0
    %965 = vmatprep.subr.mxu0 0.0
    %966 = vmatpush1.xpose.msra.mxu0 0.0
    %967 = vmatprep.subr.mxu0 0.0
    %968 = vmatpush1.xpose.msra.mxu0 0.0
    %969 = vmatprep.subr.mxu0 0.0
    %970 = vmatpush1.xpose.msra.mxu0 0.0
    %971 = vmatprep.subr.mxu0 0.0
    %972 = vmatpush1.xpose.msra.mxu0 0.0
    %973 = vmatprep.subr.mxu0 0.0
    %974 = vmatpush1.xpose.msra.mxu0 0.0
    %975 = vmatprep.subr.mxu0 0.0
    %976 = vmatpush1.xpose.msra.mxu0 0.0
    %977 = vmatprep.subr.mxu0 0.0
    %978 = vmatpush1.xpose.msra.mxu0 0.0
    %979 = vmatprep.subr.mxu0 0.0
    %980 = vmatpush1.xpose.msra.mxu0 0.0
    %981 = vmatprep.subr.mxu0 0.0
    %982 = vmatpush1.xpose.msra.mxu0 0.0
    %983 = vmatprep.subr.mxu0 0.0
    %984 = vmatpush1.xpose.msra.mxu0 0.0
    %985 = vmatprep.subr.mxu0 0.0
    %986 = vmatpush1.xpose.msra.mxu0 0.0
    %987 = vmatprep.subr.mxu0 0.0
    %988 = vmatpush1.xpose.msra.mxu0 0.0
    %989 = vmatprep.subr.mxu0 0.0
    %990 = vmatpush1.xpose.msra.mxu0 0.0
    %991 = vmatprep.subr.mxu0 0.0
    %992 = vmatpush1.xpose.msra.mxu0 0.0
    %993 = vmatprep.subr.mxu0 0.0
    %994 = vmatpush1.xpose.msra.mxu0 0.0
    %995 = vmatprep.subr.mxu0 0.0
    %996 = vmatpush1.xpose.msra.mxu0 0.0
    %997 = vmatprep.subr.mxu0 0.0
    %998 = vmatpush1.xpose.msra.mxu0 0.0
    %999 = vmatprep.subr.mxu0 0.0
    %1000 = vmatpush1.xpose.msra.mxu0 0.0
    %1001 = vmatprep.subr.mxu0 0.0
    %1002 = vmatpush1.xpose.msra.mxu0 0.0
    %1003 = vmatprep.subr.mxu0 0.0
    %1004 = vmatpush1.xpose.msra.mxu0 0.0
    %1005 = vmatprep.subr.mxu0 0.0
    %1006 = vmatpush1.xpose.msra.mxu0 0.0
    %1007 = vmatprep.mubr.f32.mxu0 0.0
    %1008 = vmatmul.mubr.f32.gmra.mrb[0].mxu0 %v939
    %v1009 = vpop.f32.mrb[0].mxu0
    %v1010 = vadd.f32 0.0, %v1009
    %v1011 = vpop.f32.mrb[0].mxu0
    %1012 = vdwg.mxu0
    %v1013 = vsel %vm188, %v932, -inf
    %1014 = vmax.xlane.f32.xlu0 %v1013
    %v1015 = vpop.xlane.xlu0 %1014
    %v1016 = vsel %vm188, %v1010, -inf
    %1017 = vmax.xlane.f32.xlu0 %v1016
    %v1018 = vpop.xlane.xlu0 %1017
    %v1019 = vsub.f32 %v932, %v1015
    %v1020 = vsub.f32 %v1010, %v1018
    %v1021 = vmul.f32 %v1019, 1.442695
    %v1022 = vpow.pop %v1021
    %v1023 = vmul.f32 %v1020, 1.442695
    %v1024 = vpow.pop %v1023
    %v1025 = vsel %vm188, %v1022, 0.0
    %1026 = vadd.xlane.f32.xlu0 %v1025
    %v1027 = vpop.xlane.xlu0 %1026
    %v1028 = vsel %vm188, %v1024, 0.0
    %1029 = vadd.xlane.f32.xlu0 %v1028
    %v1030 = vpop.xlane.xlu0 %1029
    %v1031 = vrcp.pop %v1027
    %v1032 = vrcp.pop %v1030
    %v1033 = vmul.f32 %v1022, %v1031
    %v1034 = vmul.f32 %v1024, %v1032
    %1035 = vrot.lane.b32.xlu0 %v177, 48
    %v1036 = vpop.permute.xlu0 %1035
    %v1039 = vsel %vm188, %v1033, 0
    %1041 = vmatprep.subr.mxu0 0.0
    %1042 = vmatpush1.msra.mxu0 %v1036
    %1043 = vmatprep.subr.mxu0 0.0
    %1044 = vmatpush1.msra.mxu0 0.0
    %1045 = vmatprep.subr.mxu0 0.0
    %1046 = vmatpush1.msra.mxu0 0.0
    %1047 = vmatprep.subr.mxu0 0.0
    %1048 = vmatpush1.msra.mxu0 0.0
    %1049 = vmatprep.subr.mxu0 0.0
    %1050 = vmatpush1.msra.mxu0 0.0
    %1051 = vmatprep.subr.mxu0 0.0
    %1052 = vmatpush1.msra.mxu0 0.0
    %1053 = vmatprep.subr.mxu0 0.0
    %1054 = vmatpush1.msra.mxu0 0.0
    %1055 = vmatprep.subr.mxu0 0.0
    %1056 = vmatpush1.msra.mxu0 0.0
    %1057 = vmatprep.subr.mxu0 0.0
    %1058 = vmatpush1.msra.mxu0 0.0
    %1059 = vmatprep.subr.mxu0 0.0
    %1060 = vmatpush1.msra.mxu0 0.0
    %1061 = vmatprep.subr.mxu0 0.0
    %1062 = vmatpush1.msra.mxu0 0.0
    %1063 = vmatprep.subr.mxu0 0.0
    %1064 = vmatpush1.msra.mxu0 0.0
    %1065 = vmatprep.subr.mxu0 0.0
    %1066 = vmatpush1.msra.mxu0 0.0
    %1067 = vmatprep.subr.mxu0 0.0
    %1068 = vmatpush1.msra.mxu0 0.0
    %1069 = vmatprep.subr.mxu0 0.0
    %1070 = vmatpush1.msra.mxu0 0.0
    %1071 = vmatprep.subr.mxu0 0.0
    %1072 = vmatpush1.msra.mxu0 0.0
    %1073 = vmatprep.subr.mxu0 0.0
    %1074 = vmatpush1.msra.mxu0 0.0
    %1075 = vmatprep.subr.mxu0 0.0
    %1076 = vmatpush1.msra.mxu0 0.0
    %1077 = vmatprep.subr.mxu0 0.0
    %1078 = vmatpush1.msra.mxu0 0.0
    %1079 = vmatprep.subr.mxu0 0.0
    %1080 = vmatpush1.msra.mxu0 0.0
    %1081 = vmatprep.subr.mxu0 0.0
    %1082 = vmatpush1.msra.mxu0 0.0
    %1083 = vmatprep.subr.mxu0 0.0
    %1084 = vmatpush1.msra.mxu0 0.0
    %1085 = vmatprep.subr.mxu0 0.0
    %1086 = vmatpush1.msra.mxu0 0.0
    %1087 = vmatprep.subr.mxu0 0.0
    %1088 = vmatpush1.msra.mxu0 0.0
    %1089 = vmatprep.subr.mxu0 0.0
    %1090 = vmatpush1.msra.mxu0 0.0
    %1091 = vmatprep.subr.mxu0 0.0
    %1092 = vmatpush1.msra.mxu0 0.0
    %1093 = vmatprep.subr.mxu0 0.0
    %1094 = vmatpush1.msra.mxu0 0.0
    %1095 = vmatprep.subr.mxu0 0.0
    %1096 = vmatpush1.msra.mxu0 0.0
    %1097 = vmatprep.subr.mxu0 0.0
    %1098 = vmatpush1.msra.mxu0 0.0
    %1099 = vmatprep.subr.mxu0 0.0
    %1100 = vmatpush1.msra.mxu0 0.0
    %1101 = vmatprep.subr.mxu0 0.0
    %1102 = vmatpush1.msra.mxu0 0.0
    %1103 = vmatprep.subr.mxu0 0.0
    %1104 = vmatpush1.msra.mxu0 0.0
    %1105 = vmatprep.mubr.f32.mxu0 0.0
    %1106 = vmatmul.mubr.f32.gmra.mrb[0].mxu0 %v1039
    %v1107 = vpop.f32.mrb[0].mxu0
    %v1108 = vadd.f32 0.0, %v1107
    %v1109 = vpop.f32.mrb[0].mxu0
    %1110 = vdwg.mxu0
    %1111 = vrot.lane.b32.xlu0 %v182, 48
    %v1112 = vpop.permute.xlu0 %1111
    %v1115 = vsel %vm188, %v1034, 0
    %1117 = vmatprep.subr.mxu0 0.0
    %1118 = vmatpush1.msra.mxu0 %v1112
    %1119 = vmatprep.subr.mxu0 0.0
    %1120 = vmatpush1.msra.mxu0 0.0
    %1121 = vmatprep.subr.mxu0 0.0
    %1122 = vmatpush1.msra.mxu0 0.0
    %1123 = vmatprep.subr.mxu0 0.0
    %1124 = vmatpush1.msra.mxu0 0.0
    %1125 = vmatprep.subr.mxu0 0.0
    %1126 = vmatpush1.msra.mxu0 0.0
    %1127 = vmatprep.subr.mxu0 0.0
    %1128 = vmatpush1.msra.mxu0 0.0
    %1129 = vmatprep.subr.mxu0 0.0
    %1130 = vmatpush1.msra.mxu0 0.0
    %1131 = vmatprep.subr.mxu0 0.0
    %1132 = vmatpush1.msra.mxu0 0.0
    %1133 = vmatprep.subr.mxu0 0.0
    %1134 = vmatpush1.msra.mxu0 0.0
    %1135 = vmatprep.subr.mxu0 0.0
    %1136 = vmatpush1.msra.mxu0 0.0
    %1137 = vmatprep.subr.mxu0 0.0
    %1138 = vmatpush1.msra.mxu0 0.0
    %1139 = vmatprep.subr.mxu0 0.0
    %1140 = vmatpush1.msra.mxu0 0.0
    %1141 = vmatprep.subr.mxu0 0.0
    %1142 = vmatpush1.msra.mxu0 0.0
    %1143 = vmatprep.subr.mxu0 0.0
    %1144 = vmatpush1.msra.mxu0 0.0
    %1145 = vmatprep.subr.mxu0 0.0
    %1146 = vmatpush1.msra.mxu0 0.0
    %1147 = vmatprep.subr.mxu0 0.0
    %1148 = vmatpush1.msra.mxu0 0.0
    %1149 = vmatprep.subr.mxu0 0.0
    %1150 = vmatpush1.msra.mxu0 0.0
    %1151 = vmatprep.subr.mxu0 0.0
    %1152 = vmatpush1.msra.mxu0 0.0
    %1153 = vmatprep.subr.mxu0 0.0
    %1154 = vmatpush1.msra.mxu0 0.0
    %1155 = vmatprep.subr.mxu0 0.0
    %1156 = vmatpush1.msra.mxu0 0.0
    %1157 = vmatprep.subr.mxu0 0.0
    %1158 = vmatpush1.msra.mxu0 0.0
    %1159 = vmatprep.subr.mxu0 0.0
    %1160 = vmatpush1.msra.mxu0 0.0
    %1161 = vmatprep.subr.mxu0 0.0
    %1162 = vmatpush1.msra.mxu0 0.0
    %1163 = vmatprep.subr.mxu0 0.0
    %1164 = vmatpush1.msra.mxu0 0.0
    %1165 = vmatprep.subr.mxu0 0.0
    %1166 = vmatpush1.msra.mxu0 0.0
    %1167 = vmatprep.subr.mxu0 0.0
    %1168 = vmatpush1.msra.mxu0 0.0
    %1169 = vmatprep.subr.mxu0 0.0
    %1170 = vmatpush1.msra.mxu0 0.0
    %1171 = vmatprep.subr.mxu0 0.0
    %1172 = vmatpush1.msra.mxu0 0.0
    %1173 = vmatprep.subr.mxu0 0.0
    %1174 = vmatpush1.msra.mxu0 0.0
    %1175 = vmatprep.subr.mxu0 0.0
    %1176 = vmatpush1.msra.mxu0 0.0
    %1177 = vmatprep.subr.mxu0 0.0
    %1178 = vmatpush1.msra.mxu0 0.0
    %1179 = vmatprep.subr.mxu0 0.0
    %1180 = vmatpush1.msra.mxu0 0.0
    %1181 = vmatprep.mubr.f32.mxu0 0.0
    %1182 = vmatmul.mubr.f32.gmra.mrb[0].mxu0 %v1115
    %v1183 = vpop.f32.mrb[0].mxu0
    %v1184 = vadd.f32 0.0, %v1183
    %v1185 = vpop.f32.mrb[0].mxu0
    %1186 = vdwg.mxu0
    %1189 = vrot.lane.b32.xlu0 %v1108, 16
    %v1190 = vpop.permute.xlu0 %1189
    %1191 = vrot.lane.b32.xlu0 %v1184, 16
    %v1192 = vpop.permute.xlu0 %1191
    %vm1195 = vcmask 195712
    %1196 = vst.msk [vmem:[#allocation2] sm:$0xff] %vm1195, %v1190
    %1197 = vst.msk [vmem:[#allocation2 + $0x8] sm:$0xff] %vm1195, %v1192
    %1198 = vrot.lane.b32.xlu0 %v177, 104
    %v1199 = vpop.permute.xlu0 %1198
    %1200 = vrot.lane.b32.xlu0 %v177, 72
    %v1201 = vpop.permute.xlu0 %1200
    %v1202 = vsel %vm188, %v1199, 0
    %v1204 = vsel %vm188, %v1201, 0
    %1206 = vmatprep.subr.mxu0 0.0
    %1207 = vmatpush1.xpose.msra.mxu0 %v1204
    %1208 = vmatprep.subr.mxu0 0.0
    %1209 = vmatpush1.xpose.msra.mxu0 0.0
    %1210 = vmatprep.subr.mxu0 0.0
    %1211 = vmatpush1.xpose.msra.mxu0 0.0
    %1212 = vmatprep.subr.mxu0 0.0
    %1213 = vmatpush1.xpose.msra.mxu0 0.0
    %1214 = vmatprep.subr.mxu0 0.0
    %1215 = vmatpush1.xpose.msra.mxu0 0.0
    %1216 = vmatprep.subr.mxu0 0.0
    %1217 = vmatpush1.xpose.msra.mxu0 0.0
    %1218 = vmatprep.subr.mxu0 0.0
    %1219 = vmatpush1.xpose.msra.mxu0 0.0
    %1220 = vmatprep.subr.mxu0 0.0
    %1221 = vmatpush1.xpose.msra.mxu0 0.0
    %1222 = vmatprep.subr.mxu0 0.0
    %1223 = vmatpush1.xpose.msra.mxu0 0.0
    %1224 = vmatprep.subr.mxu0 0.0
    %1225 = vmatpush1.xpose.msra.mxu0 0.0
    %1226 = vmatprep.subr.mxu0 0.0
    %1227 = vmatpush1.xpose.msra.mxu0 0.0
    %1228 = vmatprep.subr.mxu0 0.0
    %1229 = vmatpush1.xpose.msra.mxu0 0.0
    %1230 = vmatprep.subr.mxu0 0.0
    %1231 = vmatpush1.xpose.msra.mxu0 0.0
    %1232 = vmatprep.subr.mxu0 0.0
    %1233 = vmatpush1.xpose.msra.mxu0 0.0
    %1234 = vmatprep.subr.mxu0 0.0
    %1235 = vmatpush1.xpose.msra.mxu0 0.0
    %1236 = vmatprep.subr.mxu0 0.0
    %1237 = vmatpush1.xpose.msra.mxu0 0.0
    %1238 = vmatprep.subr.mxu0 0.0
    %1239 = vmatpush1.xpose.msra.mxu0 0.0
    %1240 = vmatprep.subr.mxu0 0.0
    %1241 = vmatpush1.xpose.msra.mxu0 0.0
    %1242 = vmatprep.subr.mxu0 0.0
    %1243 = vmatpush1.xpose.msra.mxu0 0.0
    %1244 = vmatprep.subr.mxu0 0.0
    %1245 = vmatpush1.xpose.msra.mxu0 0.0
    %1246 = vmatprep.subr.mxu0 0.0
    %1247 = vmatpush1.xpose.msra.mxu0 0.0
    %1248 = vmatprep.subr.mxu0 0.0
    %1249 = vmatpush1.xpose.msra.mxu0 0.0
    %1250 = vmatprep.subr.mxu0 0.0
    %1251 = vmatpush1.xpose.msra.mxu0 0.0
    %1252 = vmatprep.subr.mxu0 0.0
    %1253 = vmatpush1.xpose.msra.mxu0 0.0
    %1254 = vmatprep.subr.mxu0 0.0
    %1255 = vmatpush1.xpose.msra.mxu0 0.0
    %1256 = vmatprep.subr.mxu0 0.0
    %1257 = vmatpush1.xpose.msra.mxu0 0.0
    %1258 = vmatprep.subr.mxu0 0.0
    %1259 = vmatpush1.xpose.msra.mxu0 0.0
    %1260 = vmatprep.subr.mxu0 0.0
    %1261 = vmatpush1.xpose.msra.mxu0 0.0
    %1262 = vmatprep.subr.mxu0 0.0
    %1263 = vmatpush1.xpose.msra.mxu0 0.0
    %1264 = vmatprep.subr.mxu0 0.0
    %1265 = vmatpush1.xpose.msra.mxu0 0.0
    %1266 = vmatprep.subr.mxu0 0.0
    %1267 = vmatpush1.xpose.msra.mxu0 0.0
    %1268 = vmatprep.subr.mxu0 0.0
    %1269 = vmatpush1.xpose.msra.mxu0 0.0
    %1270 = vmatprep.mubr.f32.mxu0 0.0
    %1271 = vmatmul.mubr.f32.gmra.mrb[0].mxu0 %v1202
    %v1272 = vpop.f32.mrb[0].mxu0
    %v1273 = vadd.f32 0.0, %v1272
    %v1274 = vpop.f32.mrb[0].mxu0
    %1275 = vdwg.mxu0
    %1276 = vrot.lane.b32.xlu0 %v182, 104
    %v1277 = vpop.permute.xlu0 %1276
    %1278 = vrot.lane.b32.xlu0 %v182, 72
    %v1279 = vpop.permute.xlu0 %1278
    %v1280 = vsel %vm188, %v1277, 0
    %v1282 = vsel %vm188, %v1279, 0
    %1284 = vmatprep.subr.mxu0 0.0
    %1285 = vmatpush1.xpose.msra.mxu0 %v1282
    %1286 = vmatprep.subr.mxu0 0.0
    %1287 = vmatpush1.xpose.msra.mxu0 0.0
    %1288 = vmatprep.subr.mxu0 0.0
    %1289 = vmatpush1.xpose.msra.mxu0 0.0
    %1290 = vmatprep.subr.mxu0 0.0
    %1291 = vmatpush1.xpose.msra.mxu0 0.0
    %1292 = vmatprep.subr.mxu0 0.0
    %1293 = vmatpush1.xpose.msra.mxu0 0.0
    %1294 = vmatprep.subr.mxu0 0.0
    %1295 = vmatpush1.xpose.msra.mxu0 0.0
    %1296 = vmatprep.subr.mxu0 0.0
    %1297 = vmatpush1.xpose.msra.mxu0 0.0
    %1298 = vmatprep.subr.mxu0 0.0
    %1299 = vmatpush1.xpose.msra.mxu0 0.0
    %1300 = vmatprep.subr.mxu0 0.0
    %1301 = vmatpush1.xpose.msra.mxu0 0.0
    %1302 = vmatprep.subr.mxu0 0.0
    %1303 = vmatpush1.xpose.msra.mxu0 0.0
    %1304 = vmatprep.subr.mxu0 0.0
    %1305 = vmatpush1.xpose.msra.mxu0 0.0
    %1306 = vmatprep.subr.mxu0 0.0
    %1307 = vmatpush1.xpose.msra.mxu0 0.0
    %1308 = vmatprep.subr.mxu0 0.0
    %1309 = vmatpush1.xpose.msra.mxu0 0.0
    %1310 = vmatprep.subr.mxu0 0.0
    %1311 = vmatpush1.xpose.msra.mxu0 0.0
    %1312 = vmatprep.subr.mxu0 0.0
    %1313 = vmatpush1.xpose.msra.mxu0 0.0
    %1314 = vmatprep.subr.mxu0 0.0
    %1315 = vmatpush1.xpose.msra.mxu0 0.0
    %1316 = vmatprep.subr.mxu0 0.0
    %1317 = vmatpush1.xpose.msra.mxu0 0.0
    %1318 = vmatprep.subr.mxu0 0.0
    %1319 = vmatpush1.xpose.msra.mxu0 0.0
    %1320 = vmatprep.subr.mxu0 0.0
    %1321 = vmatpush1.xpose.msra.mxu0 0.0
    %1322 = vmatprep.subr.mxu0 0.0
    %1323 = vmatpush1.xpose.msra.mxu0 0.0
    %1324 = vmatprep.subr.mxu0 0.0
    %1325 = vmatpush1.xpose.msra.mxu0 0.0
    %1326 = vmatprep.subr.mxu0 0.0
    %1327 = vmatpush1.xpose.msra.mxu0 0.0
    %1328 = vmatprep.subr.mxu0 0.0
    %1329 = vmatpush1.xpose.msra.mxu0 0.0
    %1330 = vmatprep.subr.mxu0 0.0
    %1331 = vmatpush1.xpose.msra.mxu0 0.0
    %1332 = vmatprep.subr.mxu0 0.0
    %1333 = vmatpush1.xpose.msra.mxu0 0.0
    %1334 = vmatprep.subr.mxu0 0.0
    %1335 = vmatpush1.xpose.msra.mxu0 0.0
    %1336 = vmatprep.subr.mxu0 0.0
    %1337 = vmatpush1.xpose.msra.mxu0 0.0
    %1338 = vmatprep.subr.mxu0 0.0
    %1339 = vmatpush1.xpose.msra.mxu0 0.0
    %1340 = vmatprep.subr.mxu0 0.0
    %1341 = vmatpush1.xpose.msra.mxu0 0.0
    %1342 = vmatprep.subr.mxu0 0.0
    %1343 = vmatpush1.xpose.msra.mxu0 0.0
    %1344 = vmatprep.subr.mxu0 0.0
    %1345 = vmatpush1.xpose.msra.mxu0 0.0
    %1346 = vmatprep.subr.mxu0 0.0
    %1347 = vmatpush1.xpose.msra.mxu0 0.0
    %1348 = vmatprep.mubr.f32.mxu0 0.0
    %1349 = vmatmul.mubr.f32.gmra.mrb[0].mxu0 %v1280
    %v1350 = vpop.f32.mrb[0].mxu0
    %v1351 = vadd.f32 0.0, %v1350
    %v1352 = vpop.f32.mrb[0].mxu0
    %1353 = vdwg.mxu0
    %v1354 = vsel %vm188, %v1273, -inf
    %1355 = vmax.xlane.f32.xlu0 %v1354
    %v1356 = vpop.xlane.xlu0 %1355
    %v1357 = vsel %vm188, %v1351, -inf
    %1358 = vmax.xlane.f32.xlu0 %v1357
    %v1359 = vpop.xlane.xlu0 %1358
    %v1360 = vsub.f32 %v1273, %v1356
    %v1361 = vsub.f32 %v1351, %v1359
    %v1362 = vmul.f32 %v1360, 1.442695
    %v1363 = vpow.pop %v1362
    %v1364 = vmul.f32 %v1361, 1.442695
    %v1365 = vpow.pop %v1364
    %v1366 = vsel %vm188, %v1363, 0.0
    %1367 = vadd.xlane.f32.xlu0 %v1366
    %v1368 = vpop.xlane.xlu0 %1367
    %v1369 = vsel %vm188, %v1365, 0.0
    %1370 = vadd.xlane.f32.xlu0 %v1369
    %v1371 = vpop.xlane.xlu0 %1370
    %v1372 = vrcp.pop %v1368
    %v1373 = vrcp.pop %v1371
    %v1374 = vmul.f32 %v1363, %v1372
    %v1375 = vmul.f32 %v1365, %v1373
    %1376 = vrot.lane.b32.xlu0 %v177, 40
    %v1377 = vpop.permute.xlu0 %1376
    %v1380 = vsel %vm188, %v1374, 0
    %1382 = vmatprep.subr.mxu0 0.0
    %1383 = vmatpush1.msra.mxu0 %v1377
    %1384 = vmatprep.subr.mxu0 0.0
    %1385 = vmatpush1.msra.mxu0 0.0
    %1386 = vmatprep.subr.mxu0 0.0
    %1387 = vmatpush1.msra.mxu0 0.0
    %1388 = vmatprep.subr.mxu0 0.0
    %1389 = vmatpush1.msra.mxu0 0.0
    %1390 = vmatprep.subr.mxu0 0.0
    %1391 = vmatpush1.msra.mxu0 0.0
    %1392 = vmatprep.subr.mxu0 0.0
    %1393 = vmatpush1.msra.mxu0 0.0
    %1394 = vmatprep.subr.mxu0 0.0
    %1395 = vmatpush1.msra.mxu0 0.0
    %1396 = vmatprep.subr.mxu0 0.0
    %1397 = vmatpush1.msra.mxu0 0.0
    %1398 = vmatprep.subr.mxu0 0.0
    %1399 = vmatpush1.msra.mxu0 0.0
    %1400 = vmatprep.subr.mxu0 0.0
    %1401 = vmatpush1.msra.mxu0 0.0
    %1402 = vmatprep.subr.mxu0 0.0
    %1403 = vmatpush1.msra.mxu0 0.0
    %1404 = vmatprep.subr.mxu0 0.0
    %1405 = vmatpush1.msra.mxu0 0.0
    %1406 = vmatprep.subr.mxu0 0.0
    %1407 = vmatpush1.msra.mxu0 0.0
    %1408 = vmatprep.subr.mxu0 0.0
    %1409 = vmatpush1.msra.mxu0 0.0
    %1410 = vmatprep.subr.mxu0 0.0
    %1411 = vmatpush1.msra.mxu0 0.0
    %1412 = vmatprep.subr.mxu0 0.0
    %1413 = vmatpush1.msra.mxu0 0.0
    %1414 = vmatprep.subr.mxu0 0.0
    %1415 = vmatpush1.msra.mxu0 0.0
    %1416 = vmatprep.subr.mxu0 0.0
    %1417 = vmatpush1.msra.mxu0 0.0
    %1418 = vmatprep.subr.mxu0 0.0
    %1419 = vmatpush1.msra.mxu0 0.0
    %1420 = vmatprep.subr.mxu0 0.0
    %1421 = vmatpush1.msra.mxu0 0.0
    %1422 = vmatprep.subr.mxu0 0.0
    %1423 = vmatpush1.msra.mxu0 0.0
    %1424 = vmatprep.subr.mxu0 0.0
    %1425 = vmatpush1.msra.mxu0 0.0
    %1426 = vmatprep.subr.mxu0 0.0
    %1427 = vmatpush1.msra.mxu0 0.0
    %1428 = vmatprep.subr.mxu0 0.0
    %1429 = vmatpush1.msra.mxu0 0.0
    %1430 = vmatprep.subr.mxu0 0.0
    %1431 = vmatpush1.msra.mxu0 0.0
    %1432 = vmatprep.subr.mxu0 0.0
    %1433 = vmatpush1.msra.mxu0 0.0
    %1434 = vmatprep.subr.mxu0 0.0
    %1435 = vmatpush1.msra.mxu0 0.0
    %1436 = vmatprep.subr.mxu0 0.0
    %1437 = vmatpush1.msra.mxu0 0.0
    %1438 = vmatprep.subr.mxu0 0.0
    %1439 = vmatpush1.msra.mxu0 0.0
    %1440 = vmatprep.subr.mxu0 0.0
    %1441 = vmatpush1.msra.mxu0 0.0
    %1442 = vmatprep.subr.mxu0 0.0
    %1443 = vmatpush1.msra.mxu0 0.0
    %1444 = vmatprep.subr.mxu0 0.0
    %1445 = vmatpush1.msra.mxu0 0.0
    %1446 = vmatprep.mubr.f32.mxu0 0.0
    %1447 = vmatmul.mubr.f32.gmra.mrb[0].mxu0 %v1380
    %v1448 = vpop.f32.mrb[0].mxu0
    %v1449 = vadd.f32 0.0, %v1448
    %v1450 = vpop.f32.mrb[0].mxu0
    %1451 = vdwg.mxu0
    %1452 = vrot.lane.b32.xlu0 %v182, 40
    %v1453 = vpop.permute.xlu0 %1452
    %v1456 = vsel %vm188, %v1375, 0
    %1458 = vmatprep.subr.mxu0 0.0
    %1459 = vmatpush1.msra.mxu0 %v1453
    %1460 = vmatprep.subr.mxu0 0.0
    %1461 = vmatpush1.msra.mxu0 0.0
    %1462 = vmatprep.subr.mxu0 0.0
    %1463 = vmatpush1.msra.mxu0 0.0
    %1464 = vmatprep.subr.mxu0 0.0
    %1465 = vmatpush1.msra.mxu0 0.0
    %1466 = vmatprep.subr.mxu0 0.0
    %1467 = vmatpush1.msra.mxu0 0.0
    %1468 = vmatprep.subr.mxu0 0.0
    %1469 = vmatpush1.msra.mxu0 0.0
    %1470 = vmatprep.subr.mxu0 0.0
    %1471 = vmatpush1.msra.mxu0 0.0
    %1472 = vmatprep.subr.mxu0 0.0
    %1473 = vmatpush1.msra.mxu0 0.0
    %1474 = vmatprep.subr.mxu0 0.0
    %1475 = vmatpush1.msra.mxu0 0.0
    %1476 = vmatprep.subr.mxu0 0.0
    %1477 = vmatpush1.msra.mxu0 0.0
    %1478 = vmatprep.subr.mxu0 0.0
    %1479 = vmatpush1.msra.mxu0 0.0
    %1480 = vmatprep.subr.mxu0 0.0
    %1481 = vmatpush1.msra.mxu0 0.0
    %1482 = vmatprep.subr.mxu0 0.0
    %1483 = vmatpush1.msra.mxu0 0.0
    %1484 = vmatprep.subr.mxu0 0.0
    %1485 = vmatpush1.msra.mxu0 0.0
    %1486 = vmatprep.subr.mxu0 0.0
    %1487 = vmatpush1.msra.mxu0 0.0
    %1488 = vmatprep.subr.mxu0 0.0
    %1489 = vmatpush1.msra.mxu0 0.0
    %1490 = vmatprep.subr.mxu0 0.0
    %1491 = vmatpush1.msra.mxu0 0.0
    %1492 = vmatprep.subr.mxu0 0.0
    %1493 = vmatpush1.msra.mxu0 0.0
    %1494 = vmatprep.subr.mxu0 0.0
    %1495 = vmatpush1.msra.mxu0 0.0
    %1496 = vmatprep.subr.mxu0 0.0
    %1497 = vmatpush1.msra.mxu0 0.0
    %1498 = vmatprep.subr.mxu0 0.0
    %1499 = vmatpush1.msra.mxu0 0.0
    %1500 = vmatprep.subr.mxu0 0.0
    %1501 = vmatpush1.msra.mxu0 0.0
    %1502 = vmatprep.subr.mxu0 0.0
    %1503 = vmatpush1.msra.mxu0 0.0
    %1504 = vmatprep.subr.mxu0 0.0
    %1505 = vmatpush1.msra.mxu0 0.0
    %1506 = vmatprep.subr.mxu0 0.0
    %1507 = vmatpush1.msra.mxu0 0.0
    %1508 = vmatprep.subr.mxu0 0.0
    %1509 = vmatpush1.msra.mxu0 0.0
    %1510 = vmatprep.subr.mxu0 0.0
    %1511 = vmatpush1.msra.mxu0 0.0
    %1512 = vmatprep.subr.mxu0 0.0
    %1513 = vmatpush1.msra.mxu0 0.0
    %1514 = vmatprep.subr.mxu0 0.0
    %1515 = vmatpush1.msra.mxu0 0.0
    %1516 = vmatprep.subr.mxu0 0.0
    %1517 = vmatpush1.msra.mxu0 0.0
    %1518 = vmatprep.subr.mxu0 0.0
    %1519 = vmatpush1.msra.mxu0 0.0
    %1520 = vmatprep.subr.mxu0 0.0
    %1521 = vmatpush1.msra.mxu0 0.0
    %1522 = vmatprep.mubr.f32.mxu0 0.0
    %1523 = vmatmul.mubr.f32.gmra.mrb[0].mxu0 %v1456
    %v1524 = vpop.f32.mrb[0].mxu0
    %v1525 = vadd.f32 0.0, %v1524
    %v1526 = vpop.f32.mrb[0].mxu0
    %1527 = vdwg.mxu0
    %1530 = vrot.lane.b32.xlu0 %v1449, 24
    %v1531 = vpop.permute.xlu0 %1530
    %1532 = vrot.lane.b32.xlu0 %v1525, 24
    %v1533 = vpop.permute.xlu0 %1532
    %vm1536 = vcmask 261312
    %1537 = vst.msk [vmem:[#allocation2] sm:$0xff] %vm1536, %v1531
    %1538 = vst.msk [vmem:[#allocation2 + $0x8] sm:$0xff] %vm1536, %v1533
    %v1539 = vld [vmem:[#allocation2] sm:$0xff]
    %v1540 = vld [vmem:[#allocation2 + $0x8] sm:$0xff]
    %v1541 = vld [vmem:[%s3] sm:$0xff]
    %v1542 = vld [vmem:[%s3 + $0x8] sm:$0xff]
    %v1543 = vld [vmem:[%s3 + $0x10] sm:$0xff]
    %v1544 = vld [vmem:[%s3 + $0x18] sm:$0xff]
    %v1545 = vld [vmem:[%s4] sm:$0x1]
    %v1547 = vlaneseq
    %v1548 = vshrl.u32 %v1547, 7
    %v1549 = vsub.s32 0, %v1548
    %v1550 = vrot.slane %v1545, %v1549
    %v1553 = vsel %vm49, %v1539, 0
    %v1556 = vsel %vm49, %v1540, 0
    %1558 = vmatprep.subr.mxu0 0.0
    %1559 = vmatpush1.msra.mxu0 %v1541
    %1560 = vmatprep.subr.mxu0 0.0
    %1561 = vmatpush1.msra.mxu0 %v1542
    %1562 = vmatprep.subr.mxu0 0.0
    %1563 = vmatpush1.msra.mxu0 %v1543
    %1564 = vmatprep.subr.mxu0 0.0
    %1565 = vmatpush1.msra.mxu0 %v1544
    %1566 = vmatprep.subr.mxu0 0.0
    %1567 = vmatpush1.msra.mxu0 0.0
    %1568 = vmatprep.subr.mxu0 0.0
    %1569 = vmatpush1.msra.mxu0 0.0
    %1570 = vmatprep.subr.mxu0 0.0
    %1571 = vmatpush1.msra.mxu0 0.0
    %1572 = vmatprep.subr.mxu0 0.0
    %1573 = vmatpush1.msra.mxu0 0.0
    %1574 = vmatprep.subr.mxu0 0.0
    %1575 = vmatpush1.msra.mxu0 0.0
    %1576 = vmatprep.subr.mxu0 0.0
    %1577 = vmatpush1.msra.mxu0 0.0
    %1578 = vmatprep.subr.mxu0 0.0
    %1579 = vmatpush1.msra.mxu0 0.0
    %1580 = vmatprep.subr.mxu0 0.0
    %1581 = vmatpush1.msra.mxu0 0.0
    %1582 = vmatprep.subr.mxu0 0.0
    %1583 = vmatpush1.msra.mxu0 0.0
    %1584 = vmatprep.subr.mxu0 0.0
    %1585 = vmatpush1.msra.mxu0 0.0
    %1586 = vmatprep.subr.mxu0 0.0
    %1587 = vmatpush1.msra.mxu0 0.0
    %1588 = vmatprep.subr.mxu0 0.0
    %1589 = vmatpush1.msra.mxu0 0.0
    %1590 = vmatprep.subr.mxu0 0.0
    %1591 = vmatpush1.msra.mxu0 0.0
    %1592 = vmatprep.subr.mxu0 0.0
    %1593 = vmatpush1.msra.mxu0 0.0
    %1594 = vmatprep.subr.mxu0 0.0
    %1595 = vmatpush1.msra.mxu0 0.0
    %1596 = vmatprep.subr.mxu0 0.0
    %1597 = vmatpush1.msra.mxu0 0.0
    %1598 = vmatprep.subr.mxu0 0.0
    %1599 = vmatpush1.msra.mxu0 0.0
    %1600 = vmatprep.subr.mxu0 0.0
    %1601 = vmatpush1.msra.mxu0 0.0
    %1602 = vmatprep.subr.mxu0 0.0
    %1603 = vmatpush1.msra.mxu0 0.0
    %1604 = vmatprep.subr.mxu0 0.0
    %1605 = vmatpush1.msra.mxu0 0.0
    %1606 = vmatprep.subr.mxu0 0.0
    %1607 = vmatpush1.msra.mxu0 0.0
    %1608 = vmatprep.subr.mxu0 0.0
    %1609 = vmatpush1.msra.mxu0 0.0
    %1610 = vmatprep.subr.mxu0 0.0
    %1611 = vmatpush1.msra.mxu0 0.0
    %1612 = vmatprep.subr.mxu0 0.0
    %1613 = vmatpush1.msra.mxu0 0.0
    %1614 = vmatprep.subr.mxu0 0.0
    %1615 = vmatpush1.msra.mxu0 0.0
    %1616 = vmatprep.subr.mxu0 0.0
    %1617 = vmatpush1.msra.mxu0 0.0
    %1618 = vmatprep.subr.mxu0 0.0
    %1619 = vmatpush1.msra.mxu0 0.0
    %1620 = vmatprep.subr.mxu0 0.0
    %1621 = vmatpush1.msra.mxu0 0.0
    %1622 = vmatprep.mubr.f32.mxu0 0.0
    %1623 = vmatmul.mubr.f32.gmra.mrb[0].mxu0 %v1553
    %v1624 = vpop.f32.mrb[0].mxu0
    %v1625 = vadd.f32 %v1550, %v1624
    %v1626 = vpop.f32.mrb[0].mxu0
    %1627 = vmatprep.mubr.f32.mxu0 0.0
    %1628 = vmatmul.mubr.f32.gmra.mrb[0].mxu0 %v1556
    %v1629 = vpop.f32.mrb[0].mxu0
    %v1630 = vadd.f32 %v1550, %v1629
    %v1631 = vpop.f32.mrb[0].mxu0
    %1632 = vdwg.mxu0
    %v1633 = vadd.f32 %v45, %v1625
    %v1634 = vadd.f32 %v46, %v1630
    %v1635 = vld [vmem:[%s7] sm:$0x1]
    %v1636 = vld [vmem:[%s8] sm:$0x1]
    %v1637 = vsel %vm49, %v1633, 0.0
    %1638 = vadd.xlane.f32.xlu0 %v1637
    %v1639 = vpop.xlane.xlu0 %1638
    %v1640 = vsel %vm49, %v1634, 0.0
    %1641 = vadd.xlane.f32.xlu0 %v1640
    %v1642 = vpop.xlane.xlu0 %1641
    %v1643 = vmul.f32 %v1639, %v56
    %v1644 = vmul.f32 %v1642, %v56
    %v1645 = vsub.f32 %v1633, %v1643
    %v1646 = vsub.f32 %v1634, %v1644
    %v1647 = vmul.f32 %v1645, %v1645
    %v1648 = vmul.f32 %v1646, %v1646
    %v1649 = vsel %vm49, %v1647, 0.0
    %1650 = vadd.xlane.f32.xlu0 %v1649
    %v1651 = vpop.xlane.xlu0 %1650
    %v1652 = vsel %vm49, %v1648, 0.0
    %1653 = vadd.xlane.f32.xlu0 %v1652
    %v1654 = vpop.xlane.xlu0 %1653
    %v1655 = vmul.f32 %v1651, %v56
    %v1656 = vmul.f32 %v1654, %v56
    %v1657 = vadd.f32 %v1655, 1e-05
    %v1658 = vadd.f32 %v1656, 1e-05
    %v1659 = vrsqrt.pop %v1657
    %v1660 = vrsqrt.pop %v1658
    %v1661 = vmul.f32 %v1645, %v1659
    %v1662 = vmul.f32 %v1646, %v1660
    %v1664 = vlaneseq
    %v1665 = vshrl.u32 %v1664, 7
    %v1666 = vsub.s32 0, %v1665
    %v1667 = vrot.slane %v1635, %v1666
    %v1669 = vmul.f32 %v1661, %v1667
    %v1670 = vmul.f32 %v1662, %v1667
    %v1672 = vlaneseq
    %v1673 = vshrl.u32 %v1672, 7
    %v1674 = vsub.s32 0, %v1673
    %v1675 = vrot.slane %v1636, %v1674
    %v1677 = vadd.f32 %v1669, %v1675
    %v1678 = vadd.f32 %v1670, %v1675
    %v1679 = vld [vmem:[%s9] sm:$0xff]
    %v1680 = vld [vmem:[%s9 + $0x8] sm:$0xff]
    %v1681 = vld [vmem:[%s9 + $0x10] sm:$0xff]
    %v1682 = vld [vmem:[%s9 + $0x18] sm:$0xff]
    %v1683 = vld [vmem:[%s10] sm:$0x1]
    %v1685 = vlaneseq
    %v1686 = vshrl.u32 %v1685, 7
    %v1687 = vsub.s32 0, %v1686
    %v1688 = vrot.slane %v1683, %v1687
    %v1691 = vsel %vm49, %v1677, 0
    %v1694 = vsel %vm49, %v1678, 0
    %1696 = vmatprep.subr.mxu0 0.0
    %1697 = vmatpush1.msra.mxu0 %v1679
    %1698 = vmatprep.subr.mxu0 0.0
    %1699 = vmatpush1.msra.mxu0 %v1680
    %1700 = vmatprep.subr.mxu0 0.0
    %1701 = vmatpush1.msra.mxu0 %v1681
    %1702 = vmatprep.subr.mxu0 0.0
    %1703 = vmatpush1.msra.mxu0 %v1682
    %1704 = vmatprep.subr.mxu0 0.0
    %1705 = vmatpush1.msra.mxu0 0.0
    %1706 = vmatprep.subr.mxu0 0.0
    %1707 = vmatpush1.msra.mxu0 0.0
    %1708 = vmatprep.subr.mxu0 0.0
    %1709 = vmatpush1.msra.mxu0 0.0
    %1710 = vmatprep.subr.mxu0 0.0
    %1711 = vmatpush1.msra.mxu0 0.0
    %1712 = vmatprep.subr.mxu0 0.0
    %1713 = vmatpush1.msra.mxu0 0.0
    %1714 = vmatprep.subr.mxu0 0.0
    %1715 = vmatpush1.msra.mxu0 0.0
    %1716 = vmatprep.subr.mxu0 0.0
    %1717 = vmatpush1.msra.mxu0 0.0
    %1718 = vmatprep.subr.mxu0 0.0
    %1719 = vmatpush1.msra.mxu0 0.0
    %1720 = vmatprep.subr.mxu0 0.0
    %1721 = vmatpush1.msra.mxu0 0.0
    %1722 = vmatprep.subr.mxu0 0.0
    %1723 = vmatpush1.msra.mxu0 0.0
    %1724 = vmatprep.subr.mxu0 0.0
    %1725 = vmatpush1.msra.mxu0 0.0
    %1726 = vmatprep.subr.mxu0 0.0
    %1727 = vmatpush1.msra.mxu0 0.0
    %1728 = vmatprep.subr.mxu0 0.0
    %1729 = vmatpush1.msra.mxu0 0.0
    %1730 = vmatprep.subr.mxu0 0.0
    %1731 = vmatpush1.msra.mxu0 0.0
    %1732 = vmatprep.subr.mxu0 0.0
    %1733 = vmatpush1.msra.mxu0 0.0
    %1734 = vmatprep.subr.mxu0 0.0
    %1735 = vmatpush1.msra.mxu0 0.0
    %1736 = vmatprep.subr.mxu0 0.0
    %1737 = vmatpush1.msra.mxu0 0.0
    %1738 = vmatprep.subr.mxu0 0.0
    %1739 = vmatpush1.msra.mxu0 0.0
    %1740 = vmatprep.subr.mxu0 0.0
    %1741 = vmatpush1.msra.mxu0 0.0
    %1742 = vmatprep.subr.mxu0 0.0
    %1743 = vmatpush1.msra.mxu0 0.0
    %1744 = vmatprep.subr.mxu0 0.0
    %1745 = vmatpush1.msra.mxu0 0.0
    %1746 = vmatprep.subr.mxu0 0.0
    %1747 = vmatpush1.msra.mxu0 0.0
    %1748 = vmatprep.subr.mxu0 0.0
    %1749 = vmatpush1.msra.mxu0 0.0
    %1750 = vmatprep.subr.mxu0 0.0
    %1751 = vmatpush1.msra.mxu0 0.0
    %1752 = vmatprep.subr.mxu0 0.0
    %1753 = vmatpush1.msra.mxu0 0.0
    %1754 = vmatprep.subr.mxu0 0.0
    %1755 = vmatpush1.msra.mxu0 0.0
    %1756 = vmatprep.subr.mxu0 0.0
    %1757 = vmatpush1.msra.mxu0 0.0
    %1758 = vmatprep.subr.mxu0 0.0
    %1759 = vmatpush1.msra.mxu0 0.0
    %1760 = vmatprep.mubr.f32.mxu0 0.0
    %1761 = vmatmul.mubr.f32.gmra.mrb[0].mxu0 %v1691
    %v1762 = vpop.f32.mrb[0].mxu0
    %v1763 = vadd.f32 %v1688, %v1762
    %v1764 = vpop.f32.mrb[0].mxu0
    %1765 = vmatprep.mubr.f32.mxu0 0.0
    %1766 = vmatmul.mubr.f32.gmra.mrb[0].mxu0 %v1694
    %v1767 = vpop.f32.mrb[0].mxu0
    %v1768 = vadd.f32 %v1688, %v1767
    %v1769 = vpop.f32.mrb[0].mxu0
    %1770 = vdwg.mxu0
    %v1771 = vmax.f32 %v1763, 0.0
    %v1772 = vmax.f32 %v1768, 0.0
    %v1773 = vld [vmem:[%s11] sm:$0xff]
    %v1774 = vld [vmem:[%s11 + $0x8] sm:$0xff]
    %v1775 = vld [vmem:[%s11 + $0x10] sm:$0xff]
    %v1776 = vld [vmem:[%s11 + $0x18] sm:$0xff]
    %v1777 = vld [vmem:[%s11 + $0x20] sm:$0xff]
    %v1778 = vld [vmem:[%s11 + $0x28] sm:$0xff]
    %v1779 = vld [vmem:[%s11 + $0x30] sm:$0xff]
    %v1780 = vld [vmem:[%s11 + $0x38] sm:$0xff]
    %v1781 = vld [vmem:[%s11 + $0x40] sm:$0xff]
    %v1782 = vld [vmem:[%s11 + $0x48] sm:$0xff]
    %v1783 = vld [vmem:[%s11 + $0x50] sm:$0xff]
    %v1784 = vld [vmem:[%s11 + $0x58] sm:$0xff]
    %v1785 = vld [vmem:[%s11 + $0x60] sm:$0xff]
    %v1786 = vld [vmem:[%s11 + $0x68] sm:$0xff]
    %v1787 = vld [vmem:[%s11 + $0x70] sm:$0xff]
    %v1788 = vld [vmem:[%s11 + $0x78] sm:$0xff]
    %v1789 = vld [vmem:[%s12] sm:$0x1]
    %v1791 = vlaneseq
    %v1792 = vshrl.u32 %v1791, 7
    %v1793 = vsub.s32 0, %v1792
    %v1794 = vrot.slane %v1789, %v1793
    %1796 = vmatprep.subr.mxu0 0.0
    %1797 = vmatpush1.msra.mxu0 %v1773
    %1798 = vmatprep.subr.mxu0 0.0
    %1799 = vmatpush1.msra.mxu0 %v1774
    %1800 = vmatprep.subr.mxu0 0.0
    %1801 = vmatpush1.msra.mxu0 %v1775
    %1802 = vmatprep.subr.mxu0 0.0
    %1803 = vmatpush1.msra.mxu0 %v1776
    %1804 = vmatprep.subr.mxu0 0.0
    %1805 = vmatpush1.msra.mxu0 %v1777
    %1806 = vmatprep.subr.mxu0 0.0
    %1807 = vmatpush1.msra.mxu0 %v1778
    %1808 = vmatprep.subr.mxu0 0.0
    %1809 = vmatpush1.msra.mxu0 %v1779
    %1810 = vmatprep.subr.mxu0 0.0
    %1811 = vmatpush1.msra.mxu0 %v1780
    %1812 = vmatprep.subr.mxu0 0.0
    %1813 = vmatpush1.msra.mxu0 %v1781
    %1814 = vmatprep.subr.mxu0 0.0
    %1815 = vmatpush1.msra.mxu0 %v1782
    %1816 = vmatprep.subr.mxu0 0.0
    %1817 = vmatpush1.msra.mxu0 %v1783
    %1818 = vmatprep.subr.mxu0 0.0
    %1819 = vmatpush1.msra.mxu0 %v1784
    %1820 = vmatprep.subr.mxu0 0.0
    %1821 = vmatpush1.msra.mxu0 %v1785
    %1822 = vmatprep.subr.mxu0 0.0
    %1823 = vmatpush1.msra.mxu0 %v1786
    %1824 = vmatprep.subr.mxu0 0.0
    %1825 = vmatpush1.msra.mxu0 %v1787
    %1826 = vmatprep.subr.mxu0 0.0
    %1827 = vmatpush1.msra.mxu0 %v1788
    %1828 = vmatprep.subr.mxu0 0.0
    %1829 = vmatpush1.msra.mxu0 0.0
    %1830 = vmatprep.subr.mxu0 0.0
    %1831 = vmatpush1.msra.mxu0 0.0
    %1832 = vmatprep.subr.mxu0 0.0
    %1833 = vmatpush1.msra.mxu0 0.0
    %1834 = vmatprep.subr.mxu0 0.0
    %1835 = vmatpush1.msra.mxu0 0.0
    %1836 = vmatprep.subr.mxu0 0.0
    %1837 = vmatpush1.msra.mxu0 0.0
    %1838 = vmatprep.subr.mxu0 0.0
    %1839 = vmatpush1.msra.mxu0 0.0
    %1840 = vmatprep.subr.mxu0 0.0
    %1841 = vmatpush1.msra.mxu0 0.0
    %1842 = vmatprep.subr.mxu0 0.0
    %1843 = vmatpush1.msra.mxu0 0.0
    %1844 = vmatprep.subr.mxu0 0.0
    %1845 = vmatpush1.msra.mxu0 0.0
    %1846 = vmatprep.subr.mxu0 0.0
    %1847 = vmatpush1.msra.mxu0 0.0
    %1848 = vmatprep.subr.mxu0 0.0
    %1849 = vmatpush1.msra.mxu0 0.0
    %1850 = vmatprep.subr.mxu0 0.0
    %1851 = vmatpush1.msra.mxu0 0.0
    %1852 = vmatprep.subr.mxu0 0.0
    %1853 = vmatpush1.msra.mxu0 0.0
    %1854 = vmatprep.subr.mxu0 0.0
    %1855 = vmatpush1.msra.mxu0 0.0
    %1856 = vmatprep.subr.mxu0 0.0
    %1857 = vmatpush1.msra.mxu0 0.0
    %1858 = vmatprep.subr.mxu0 0.0
    %1859 = vmatpush1.msra.mxu0 0.0
    %1860 = vmatprep.mubr.f32.mxu0 0.0
    %1861 = vmatmul.mubr.f32.gmra.mrb[0].mxu0 %v1771
    %v1862 = vpop.f32.mrb[0].mxu0
    %v1863 = vadd.f32 %v1794, %v1862
    %v1864 = vpop.f32.mrb[0].mxu0
    %1865 = vmatprep.mubr.f32.mxu0 0.0
    %1866 = vmatmul.mubr.f32.gmra.mrb[0].mxu0 %v1772
    %v1867 = vpop.f32.mrb[0].mxu0
    %v1868 = vadd.f32 %v1794, %v1867
    %v1869 = vpop.f32.mrb[0].mxu0
    %1870 = vdwg.mxu0
    %v1871 = vadd.f32 %v1633, %v1863
    %v1872 = vadd.f32 %v1634, %v1868
    %1873 = vst.msk [vmem:[#allocation3] sm:$0xff] %vm49, %v1871
    %1874 = vst.msk [vmem:[#allocation3 + $0x8] sm:$0xff] %vm49, %v1872
    // Predicated region
    $region54: #{psead_transformer_block.1} parent=1 // pred_check
      _
    $region55: #{psead_transformer_block.1} parent=1 // pred_check_branch
      %1876 = sbr.rel (0) target = $region57
    $region56: #{psead_transformer_block.1} parent=1 // pred_region
      %s1878 = ssub.s32 256, 256
      %1879 = vsyncadd [#allocation4], %s1878
      %s1880 = sshll.u32 [#allocation3], 4
      %s1881 = int_to_ptr.vmem [resolvable:$true] %s1880
      %1886 = dma.vmem_to_hbm [thread:$0]  %s1881, 256, %s13, [#allocation4], 128, 128, 8
    $region57: #{psead_transformer_block.1} parent=1 // pred_fallthru
      _
    // Predicated region
    $region58: #{psead_transformer_block.1} parent=1 // pred_check
      _
    $region59: #{psead_transformer_block.1} parent=1 // pred_check_branch
      %1888 = sbr.rel (0) target = $region61
    $region60: #{psead_transformer_block.1} parent=1 // pred_region
      %1889 = dma.done [#allocation4], 256
    $region61: #{psead_transformer_block.1} parent=1 // pred_fallthru
      _
    %1890 = vsyncpa [#allocation4], 1

</llo_original>
